<compile_context>
chip_gen: v7x
topology: tpu7x:2x2x1
jax: 0.10.0
libtpu: 0.0.40
codegen_flags: <defaults>
</compile_context>

<pallas_src>
import functools

import jax
import jax.numpy as jnp
from jax import lax
from jax.experimental import pallas as pl
from jax.experimental.pallas import tpu as pltpu

BN_EPS = 1e-5


def _round_up(v, m):
    return ((v + m - 1) // m) * m


def _conv_taps(x_ref, w_ref, *, n_cols, w_pad, kh_taps, kw_taps):
    """Fused im2col conv: z[o, b] = sum_{kh,kw,c} w[kh,kw,o,c] * x[c, b + kh*w_pad + kw].

    x_ref : (Cin, S_pad) bf16 ref -- one zero-padded image flattened row-major
            (flat index b = r*w_pad + col).
    w_ref : (KH*KW, Cout, Cin) bf16 ref.
    Returns a (Cout, n_cols) f32 block; column b holds the conv output anchored at flat
    position b (garbage for non-valid anchors -- masked / ignored downstream).
    """
    acc = None
    for kh in range(kh_taps):
        for kw in range(kw_taps):
            d = kh * w_pad + kw                        # static lane offset of this tap
            xs = x_ref[:, pl.ds(d, n_cols)]            # (Cin, n_cols) shifted window
            z = jnp.dot(w_ref[kh * kw_taps + kw], xs,
                        preferred_element_type=jnp.float32)
            acc = z if acc is None else acc + z
    return acc


def conv_stats_kernel(x_ref, w_ref, mask_ref, sum_ref, sq_ref, *,
                      n_cols, w_pad, kh_taps, kw_taps):
    """Pass 1: fused conv + per-channel batch sum / sum-of-squares (one-pass variance)."""
    @pl.when(pl.program_id(0) == 0)
    def _init():
        sum_ref[...] = jnp.zeros_like(sum_ref)
        sq_ref[...] = jnp.zeros_like(sq_ref)

    z = _conv_taps(x_ref, w_ref, n_cols=n_cols, w_pad=w_pad,
                   kh_taps=kh_taps, kw_taps=kw_taps)
    zm = z * mask_ref[...]                             # zero out invalid / padded lanes
    sum_ref[...] += jnp.sum(zm, axis=1, keepdims=True)
    sq_ref[...] += jnp.sum(zm * z, axis=1, keepdims=True)


def conv_bn_relu_pool_kernel(x_ref, w_ref, ac_ref, o_ref, y_scr, *,
                             n_cols, w_pad, kh_taps, kw_taps, pool):
    """Pass 2: fused conv, folded BN scale/shift, ReLU, 2x2 max-pool, lane-dense store."""
    z = _conv_taps(x_ref, w_ref, n_cols=n_cols, w_pad=w_pad,
                   kh_taps=kh_taps, kw_taps=kw_taps)
    # Folded BatchNorm affine (a = gamma*rsqrt(var+eps), c = beta - mean*a) + ReLU.
    y_scr[...] = jnp.maximum(z * ac_ref[:, 0:1] + ac_ref[:, 1:2], 0.0)
    # MaxPool2d(2): the 4 window offsets {0, 1, w_pad, w_pad+1} are static lane shifts.
    ow = o_ref.shape[-1]
    p = None
    for di in range(pool):
        for dj in range(pool):
            off = di * w_pad + dj
            v = y_scr[:, pl.ds(off, ow)]
            p = v if p is None else jnp.maximum(p, v)
    o_ref[...] = p


def conv_block_forward(x, w, b, gamma, beta, *, stride=1, pad=1, pool=2):
    """x: (N, Cin, H, W) f32 NCHW (like PyTorch).  Returns pooled NCHW output.

    `b` is accepted for API parity with nn.Conv2d but not used: with train-mode BatchNorm
    the batch-mean subtraction cancels the conv bias exactly.
    """
    del b
    assert stride == 1, "TODO(synk): shifted-matmul conv path assumes stride == 1"
    N, Cin, H, W = x.shape
    Cout, _, KH, KW = w.shape
    H_pad, W_pad = H + 2 * pad, W + 2 * pad
    Ho, Wo = H_pad - KH + 1, W_pad - KW + 1
    assert Ho % pool == 0 and Wo % pool == 0
    Hq, Wq = Ho // pool, Wo // pool
    S = H_pad * W_pad                                  # flat padded image length
    d_max = (KH - 1) * W_pad + (KW - 1)                # largest conv-tap lane offset
    # Lane-dense (128-multiple) pooled-slab width: must cover every 2x2-pool anchor.
    OW = _round_up((Ho - pool) * W_pad + (Wo - pool) + 1, 128)
    # Conv-tile width: must cover all valid conv anchors and all pool-window reads.
    MQ = _round_up(max((Ho - 1) * W_pad + Wo, OW + (pool - 1) * (W_pad + 1)), 128)
    S_pad = _round_up(MQ + d_max, 128)

    # ---- glue: one flat bf16 lane row per (image, channel); weights as per-tap matrices ----
    x_flat = jnp.pad(x, ((0, 0), (0, 0), (pad, pad), (pad, pad)))
    x_flat = x_flat.reshape(N, Cin, S).astype(jnp.bfloat16)
    x_flat = jnp.pad(x_flat, ((0, 0), (0, 0), (0, S_pad - S)))
    # (Cout, Cin, KH, KW) -> (KH*KW, Cout, Cin); tap t = kh*KW + kw.
    w_taps = jnp.transpose(w, (2, 3, 0, 1)).reshape(KH * KW, Cout, Cin).astype(jnp.bfloat16)
    # Validity mask over flat conv anchors b = i*W_pad + j (1 iff i < Ho and j < Wo).
    bidx = jnp.arange(MQ)
    mask = ((bidx % W_pad < Wo) & (bidx // W_pad < Ho)).astype(jnp.float32)[None, :]

    vmem_limit = 32 * 1024 * 1024  # KB-scale tiles here; re-derive when tiling large shapes

    # ---- pass 1: per-channel sum / sum-of-squares of the conv output over the batch ----
    zsum, zsq = pl.pallas_call(
        functools.partial(conv_stats_kernel, n_cols=MQ, w_pad=W_pad,
                          kh_taps=KH, kw_taps=KW),
        out_shape=(jax.ShapeDtypeStruct((Cout, 1), jnp.float32),
                   jax.ShapeDtypeStruct((Cout, 1), jnp.float32)),
        grid=(N,),
        in_specs=[
            pl.BlockSpec((None, Cin, S_pad), lambda n: (n, 0, 0)),
            pl.BlockSpec((KH * KW, Cout, Cin), lambda n: (0, 0, 0)),   # VMEM-resident
            pl.BlockSpec((1, MQ), lambda n: (0, 0)),                   # VMEM-resident
        ],
        out_specs=(pl.BlockSpec((Cout, 1), lambda n: (0, 0)),          # resident accumulators
                   pl.BlockSpec((Cout, 1), lambda n: (0, 0))),
        compiler_params=pltpu.CompilerParams(
            dimension_semantics=("arbitrary",), vmem_limit_bytes=vmem_limit),
    )(x_flat, w_taps, mask)

    # ---- glue: fold batch stats + gamma/beta into one per-channel scale & shift ----
    cnt = float(N * Ho * Wo)
    mean = zsum[:, 0] / cnt
    var = jnp.maximum(zsq[:, 0] / cnt - mean * mean, 0.0)  # one-pass biased variance (f32)
    a = gamma * lax.rsqrt(var + BN_EPS)
    c = beta - mean * a
    ac = jnp.stack([a, c], axis=1).astype(jnp.float32)     # (Cout, 2)

    # ---- pass 2: fused conv + y = z*a + c + ReLU + 2x2 max-pool, lane-dense stores ----
    pooled = pl.pallas_call(
        functools.partial(conv_bn_relu_pool_kernel, n_cols=MQ, w_pad=W_pad,
                          kh_taps=KH, kw_taps=KW, pool=pool),
        out_shape=jax.ShapeDtypeStruct((N, Cout, OW), jnp.float32),
        grid=(N,),
        in_specs=[
            pl.BlockSpec((None, Cin, S_pad), lambda n: (n, 0, 0)),
            pl.BlockSpec((KH * KW, Cout, Cin), lambda n: (0, 0, 0)),
            pl.BlockSpec((Cout, 2), lambda n: (0, 0)),
        ],
        out_specs=pl.BlockSpec((None, Cout, OW), lambda n: (n, 0, 0)),
        scratch_shapes=[pltpu.VMEM((Cout, MQ), jnp.float32)],
        compiler_params=pltpu.CompilerParams(
            dimension_semantics=("parallel",), vmem_limit_bytes=vmem_limit),
    )(x_flat, w_taps, ac)

    # ---- glue: gather the valid pool anchors b = (pool*i)*W_pad + pool*j  -> NCHW ----
    anchors = (pool * jnp.arange(Hq)[:, None] * W_pad
               + pool * jnp.arange(Wq)[None, :]).reshape(-1)
    return pooled[:, :, anchors].reshape(N, Cout, Hq, Wq)


def reference_forward(x, w, b, gamma, beta, *, stride=1, pad=1, pool=2,
                      matmul_dtype=jnp.float32):
    z = lax.conv_general_dilated(
        x.astype(matmul_dtype), w.astype(matmul_dtype),
        (stride, stride), ((pad, pad), (pad, pad)),
        dimension_numbers=("NCHW", "OIHW", "NCHW"),
        preferred_element_type=jnp.float32)
    z = z + b.reshape(1, -1, 1, 1)
    mean = z.mean(axis=(0, 2, 3), keepdims=True)
    var = jnp.square(z - mean).mean(axis=(0, 2, 3), keepdims=True)  # biased (train mode)
    y = gamma.reshape(1, -1, 1, 1) * (z - mean) / jnp.sqrt(var + BN_EPS)
    y = y + beta.reshape(1, -1, 1, 1)
    y = jnp.maximum(y, 0.0)
    N, C, H, W = y.shape
    return y.reshape(N, C, H // pool, pool, W // pool, pool).max(axis=(3, 5))


if __name__ == "__main__":
    # module config: ConvBlock(in_channels=4, out_channels=8, kernel_size=3, stride=1)
    N, Cin, H, W = 2, 4, 16, 16
    Cout, KH, KW, stride = 8, 3, 3, 1

    key = jax.random.PRNGKey(0)
    kx, kw_, kb, kg, kbe = jax.random.split(key, 5)
    x = jax.random.normal(kx, (N, Cin, H, W), jnp.float32)
    w = jax.random.normal(kw_, (Cout, Cin, KH, KW), jnp.float32) * 0.1
    b = jax.random.normal(kb, (Cout,), jnp.float32) * 0.1
    gamma = 1.0 + 0.1 * jax.random.normal(kg, (Cout,), jnp.float32)
    beta = 0.1 * jax.random.normal(kbe, (Cout,), jnp.float32)

    out = conv_block_forward(x, w, b, gamma, beta, stride=stride)
    out = jax.block_until_ready(out)
    assert out.shape == (N, Cout, H // 2, W // 2), out.shape

    # Tight check vs. a reference using the same bf16 matmul operands (f32 accumulation):
    ref_bf16 = reference_forward(x, w, b, gamma, beta, stride=stride,
                                 matmul_dtype=jnp.bfloat16)
    err_b = float(jnp.max(jnp.abs(out - ref_bf16)))
    assert jnp.allclose(out, ref_bf16, atol=2e-3, rtol=2e-3), err_b

    # Sanity check vs. the pure-f32 PyTorch-semantics reference (bf16 operands loosen this):
    ref_f32 = reference_forward(x, w, b, gamma, beta, stride=stride,
                                matmul_dtype=jnp.float32)
    err_f = float(jnp.max(jnp.abs(out - ref_f32)))
    assert jnp.allclose(out, ref_f32, atol=5e-2, rtol=5e-2), err_f

    print("KERNEL_OK")
</pallas_src>

<mosaic_0001>
module attributes {stable_mosaic.version = 11 : i64} {
  func.func @conv_stats_kernel(%arg0: i32, %arg1: memref<1x4x640xbf16, #tpu.memory_space<vmem>>, %arg2: memref<9x8x4xbf16, #tpu.memory_space<vmem>>, %arg3: memref<1x512xf32, #tpu.memory_space<vmem>>, %arg4: memref<8x1xf32, #tpu.memory_space<vmem>>, %arg5: memref<8x1xf32, #tpu.memory_space<vmem>>) attributes {dimension_semantics = [#tpu.dimension_semantics<arbitrary>], iteration_bounds = array<i64: 2>, scalar_prefetch = 0 : i64, scratch_operands = 0 : i64, tpu.core_type = #tpu.core_type<tc>, window_params = [{transform_indices = @transform_0, window_bounds = array<i64: 1, 4, 640>}, {pipeline_mode = #tpu.pipeline_mode<synchronous>, transform_indices = @transform_1, window_bounds = array<i64: 9, 8, 4>}, {pipeline_mode = #tpu.pipeline_mode<synchronous>, transform_indices = @transform_2, window_bounds = array<i64: 1, 512>}, {pipeline_mode = #tpu.pipeline_mode<synchronous>, transform_indices = @transform_3, window_bounds = array<i64: 8, 1>}, {pipeline_mode = #tpu.pipeline_mode<synchronous>, transform_indices = @transform_4, window_bounds = array<i64: 8, 1>}]} {
    %c0_i32 = arith.constant 0 : i32
    %0 = arith.cmpi eq, %arg0, %c0_i32 : i32
    %1 = arith.extui %0 : i1 to i32
    %c0_i32_0 = arith.constant 0 : i32
    %2 = arith.cmpi ne, %1, %c0_i32_0 : i32
    scf.if %2 {
      %cst_60 = arith.constant 0.000000e+00 : f32
      %70 = vector.broadcast %cst_60 : f32 to vector<8x1xf32>
      %c0_61 = arith.constant 0 : index
      %c0_62 = arith.constant 0 : index
      %71 = vector.load %arg4[%c0_61, %c0_62] : memref<8x1xf32, #tpu.memory_space<vmem>>, vector<8x1xf32>
      tpu.vector_store %arg4[%c0_61, %c0_62], %70 {strides = array<i32>} : memref<8x1xf32, #tpu.memory_space<vmem>>, vector<8x1xf32>,
      %cst_63 = arith.constant 0.000000e+00 : f32
      %72 = vector.broadcast %cst_63 : f32 to vector<8x1xf32>
      %c0_64 = arith.constant 0 : index
      %c0_65 = arith.constant 0 : index
      %73 = vector.load %arg5[%c0_64, %c0_65] : memref<8x1xf32, #tpu.memory_space<vmem>>, vector<8x1xf32>
      tpu.vector_store %arg5[%c0_64, %c0_65], %72 {strides = array<i32>} : memref<8x1xf32, #tpu.memory_space<vmem>>, vector<8x1xf32>,
    } else {
    }
    %c0 = arith.constant 0 : index
    %c0_1 = arith.constant 0 : index
    %c0_2 = arith.constant 0 : index
    %3 = vector.load %arg1[%c0, %c0_1, %c0_2] : memref<1x4x640xbf16, #tpu.memory_space<vmem>>, vector<1x4x512xbf16>
    %4 = vector.shape_cast %3 : vector<1x4x512xbf16> to vector<4x512xbf16>
    %c0_3 = arith.constant 0 : index
    %c0_4 = arith.constant 0 : index
    %c0_5 = arith.constant 0 : index
    %5 = vector.load %arg2[%c0_3, %c0_4, %c0_5] : memref<9x8x4xbf16, #tpu.memory_space<vmem>>, vector<1x8x4xbf16>
    %6 = vector.shape_cast %5 : vector<1x8x4xbf16> to vector<8x4xbf16>
    %cst = arith.constant dense<0.000000e+00> : vector<8x512xf32>
    %7 = tpu.matmul %6, %4, %cst {dimension_numbers = #tpu.dot_dimension_numbers<[1], [0], [0], [1], [0, 0, 1, 1], [], []>} : vector<8x4xbf16>, vector<4x512xbf16>, vector<8x512xf32> -> vector<8x512xf32>
    %c0_6 = arith.constant 0 : index
    %c0_7 = arith.constant 0 : index
    %c1 = arith.constant 1 : index
    %8 = vector.load %arg1[%c0_6, %c0_7, %c1] : memref<1x4x640xbf16, #tpu.memory_space<vmem>>, vector<1x4x512xbf16>
    %9 = vector.shape_cast %8 : vector<1x4x512xbf16> to vector<4x512xbf16>
    %c1_8 = arith.constant 1 : index
    %c0_9 = arith.constant 0 : index
    %c0_10 = arith.constant 0 : index
    %10 = vector.load %arg2[%c1_8, %c0_9, %c0_10] : memref<9x8x4xbf16, #tpu.memory_space<vmem>>, vector<1x8x4xbf16>
    %11 = vector.shape_cast %10 : vector<1x8x4xbf16> to vector<8x4xbf16>
    %cst_11 = arith.constant dense<0.000000e+00> : vector<8x512xf32>
    %12 = tpu.matmul %11, %9, %cst_11 {dimension_numbers = #tpu.dot_dimension_numbers<[1], [0], [0], [1], [0, 0, 1, 1], [], []>} : vector<8x4xbf16>, vector<4x512xbf16>, vector<8x512xf32> -> vector<8x512xf32>
    %13 = arith.addf %7, %12 : vector<8x512xf32>
    %c0_12 = arith.constant 0 : index
    %c0_13 = arith.constant 0 : index
    %c2 = arith.constant 2 : index
    %14 = vector.load %arg1[%c0_12, %c0_13, %c2] : memref<1x4x640xbf16, #tpu.memory_space<vmem>>, vector<1x4x512xbf16>
    %15 = vector.shape_cast %14 : vector<1x4x512xbf16> to vector<4x512xbf16>
    %c2_14 = arith.constant 2 : index
    %c0_15 = arith.constant 0 : index
    %c0_16 = arith.constant 0 : index
    %16 = vector.load %arg2[%c2_14, %c0_15, %c0_16] : memref<9x8x4xbf16, #tpu.memory_space<vmem>>, vector<1x8x4xbf16>
    %17 = vector.shape_cast %16 : vector<1x8x4xbf16> to vector<8x4xbf16>
    %cst_17 = arith.constant dense<0.000000e+00> : vector<8x512xf32>
    %18 = tpu.matmul %17, %15, %cst_17 {dimension_numbers = #tpu.dot_dimension_numbers<[1], [0], [0], [1], [0, 0, 1, 1], [], []>} : vector<8x4xbf16>, vector<4x512xbf16>, vector<8x512xf32> -> vector<8x512xf32>
    %19 = arith.addf %13, %18 : vector<8x512xf32>
    %c0_18 = arith.constant 0 : index
    %c0_19 = arith.constant 0 : index
    %c18 = arith.constant 18 : index
    %20 = vector.load %arg1[%c0_18, %c0_19, %c18] : memref<1x4x640xbf16, #tpu.memory_space<vmem>>, vector<1x4x512xbf16>
    %21 = vector.shape_cast %20 : vector<1x4x512xbf16> to vector<4x512xbf16>
    %c3 = arith.constant 3 : index
    %c0_20 = arith.constant 0 : index
    %c0_21 = arith.constant 0 : index
    %22 = vector.load %arg2[%c3, %c0_20, %c0_21] : memref<9x8x4xbf16, #tpu.memory_space<vmem>>, vector<1x8x4xbf16>
    %23 = vector.shape_cast %22 : vector<1x8x4xbf16> to vector<8x4xbf16>
    %cst_22 = arith.constant dense<0.000000e+00> : vector<8x512xf32>
    %24 = tpu.matmul %23, %21, %cst_22 {dimension_numbers = #tpu.dot_dimension_numbers<[1], [0], [0], [1], [0, 0, 1, 1], [], []>} : vector<8x4xbf16>, vector<4x512xbf16>, vector<8x512xf32> -> vector<8x512xf32>
    %25 = arith.addf %19, %24 : vector<8x512xf32>
    %c0_23 = arith.constant 0 : index
    %c0_24 = arith.constant 0 : index
    %c19 = arith.constant 19 : index
    %26 = vector.load %arg1[%c0_23, %c0_24, %c19] : memref<1x4x640xbf16, #tpu.memory_space<vmem>>, vector<1x4x512xbf16>
    %27 = vector.shape_cast %26 : vector<1x4x512xbf16> to vector<4x512xbf16>
    %c4 = arith.constant 4 : index
    %c0_25 = arith.constant 0 : index
    %c0_26 = arith.constant 0 : index
    %28 = vector.load %arg2[%c4, %c0_25, %c0_26] : memref<9x8x4xbf16, #tpu.memory_space<vmem>>, vector<1x8x4xbf16>
    %29 = vector.shape_cast %28 : vector<1x8x4xbf16> to vector<8x4xbf16>
    %cst_27 = arith.constant dense<0.000000e+00> : vector<8x512xf32>
    %30 = tpu.matmul %29, %27, %cst_27 {dimension_numbers = #tpu.dot_dimension_numbers<[1], [0], [0], [1], [0, 0, 1, 1], [], []>} : vector<8x4xbf16>, vector<4x512xbf16>, vector<8x512xf32> -> vector<8x512xf32>
    %31 = arith.addf %25, %30 : vector<8x512xf32>
    %c0_28 = arith.constant 0 : index
    %c0_29 = arith.constant 0 : index
    %c20 = arith.constant 20 : index
    %32 = vector.load %arg1[%c0_28, %c0_29, %c20] : memref<1x4x640xbf16, #tpu.memory_space<vmem>>, vector<1x4x512xbf16>
    %33 = vector.shape_cast %32 : vector<1x4x512xbf16> to vector<4x512xbf16>
    %c5 = arith.constant 5 : index
    %c0_30 = arith.constant 0 : index
    %c0_31 = arith.constant 0 : index
    %34 = vector.load %arg2[%c5, %c0_30, %c0_31] : memref<9x8x4xbf16, #tpu.memory_space<vmem>>, vector<1x8x4xbf16>
    %35 = vector.shape_cast %34 : vector<1x8x4xbf16> to vector<8x4xbf16>
    %cst_32 = arith.constant dense<0.000000e+00> : vector<8x512xf32>
    %36 = tpu.matmul %35, %33, %cst_32 {dimension_numbers = #tpu.dot_dimension_numbers<[1], [0], [0], [1], [0, 0, 1, 1], [], []>} : vector<8x4xbf16>, vector<4x512xbf16>, vector<8x512xf32> -> vector<8x512xf32>
    %37 = arith.addf %31, %36 : vector<8x512xf32>
    %c0_33 = arith.constant 0 : index
    %c0_34 = arith.constant 0 : index
    %c36 = arith.constant 36 : index
    %38 = vector.load %arg1[%c0_33, %c0_34, %c36] : memref<1x4x640xbf16, #tpu.memory_space<vmem>>, vector<1x4x512xbf16>
    %39 = vector.shape_cast %38 : vector<1x4x512xbf16> to vector<4x512xbf16>
    %c6 = arith.constant 6 : index
    %c0_35 = arith.constant 0 : index
    %c0_36 = arith.constant 0 : index
    %40 = vector.load %arg2[%c6, %c0_35, %c0_36] : memref<9x8x4xbf16, #tpu.memory_space<vmem>>, vector<1x8x4xbf16>
    %41 = vector.shape_cast %40 : vector<1x8x4xbf16> to vector<8x4xbf16>
    %cst_37 = arith.constant dense<0.000000e+00> : vector<8x512xf32>
    %42 = tpu.matmul %41, %39, %cst_37 {dimension_numbers = #tpu.dot_dimension_numbers<[1], [0], [0], [1], [0, 0, 1, 1], [], []>} : vector<8x4xbf16>, vector<4x512xbf16>, vector<8x512xf32> -> vector<8x512xf32>
    %43 = arith.addf %37, %42 : vector<8x512xf32>
    %c0_38 = arith.constant 0 : index
    %c0_39 = arith.constant 0 : index
    %c37 = arith.constant 37 : index
    %44 = vector.load %arg1[%c0_38, %c0_39, %c37] : memref<1x4x640xbf16, #tpu.memory_space<vmem>>, vector<1x4x512xbf16>
    %45 = vector.shape_cast %44 : vector<1x4x512xbf16> to vector<4x512xbf16>
    %c7 = arith.constant 7 : index
    %c0_40 = arith.constant 0 : index
    %c0_41 = arith.constant 0 : index
    %46 = vector.load %arg2[%c7, %c0_40, %c0_41] : memref<9x8x4xbf16, #tpu.memory_space<vmem>>, vector<1x8x4xbf16>
    %47 = vector.shape_cast %46 : vector<1x8x4xbf16> to vector<8x4xbf16>
    %cst_42 = arith.constant dense<0.000000e+00> : vector<8x512xf32>
    %48 = tpu.matmul %47, %45, %cst_42 {dimension_numbers = #tpu.dot_dimension_numbers<[1], [0], [0], [1], [0, 0, 1, 1], [], []>} : vector<8x4xbf16>, vector<4x512xbf16>, vector<8x512xf32> -> vector<8x512xf32>
    %49 = arith.addf %43, %48 : vector<8x512xf32>
    %c0_43 = arith.constant 0 : index
    %c0_44 = arith.constant 0 : index
    %c38 = arith.constant 38 : index
    %50 = vector.load %arg1[%c0_43, %c0_44, %c38] : memref<1x4x640xbf16, #tpu.memory_space<vmem>>, vector<1x4x512xbf16>
    %51 = vector.shape_cast %50 : vector<1x4x512xbf16> to vector<4x512xbf16>
    %c8 = arith.constant 8 : index
    %c0_45 = arith.constant 0 : index
    %c0_46 = arith.constant 0 : index
    %52 = vector.load %arg2[%c8, %c0_45, %c0_46] : memref<9x8x4xbf16, #tpu.memory_space<vmem>>, vector<1x8x4xbf16>
    %53 = vector.shape_cast %52 : vector<1x8x4xbf16> to vector<8x4xbf16>
    %cst_47 = arith.constant dense<0.000000e+00> : vector<8x512xf32>
    %54 = tpu.matmul %53, %51, %cst_47 {dimension_numbers = #tpu.dot_dimension_numbers<[1], [0], [0], [1], [0, 0, 1, 1], [], []>} : vector<8x4xbf16>, vector<4x512xbf16>, vector<8x512xf32> -> vector<8x512xf32>
    %55 = arith.addf %49, %54 : vector<8x512xf32>
    %c0_48 = arith.constant 0 : index
    %c0_49 = arith.constant 0 : index
    %56 = vector.load %arg3[%c0_48, %c0_49] : memref<1x512xf32, #tpu.memory_space<vmem>>, vector<1x512xf32>
    %57 = vector.broadcast %56 : vector<1x512xf32> to vector<8x512xf32>
    %58 = arith.mulf %55, %57 : vector<8x512xf32>
    %c0_50 = arith.constant 0 : index
    %c0_51 = arith.constant 0 : index
    %59 = vector.load %arg4[%c0_50, %c0_51] : memref<8x1xf32, #tpu.memory_space<vmem>>, vector<8x1xf32>
    %cst_52 = arith.constant dense<0.000000e+00> : vector<8xf32>
    %60 = vector.multi_reduction <add>, %58, %cst_52 [1] : vector<8x512xf32> to vector<8xf32>
    %61 = vector.shape_cast %60 : vector<8xf32> to vector<8x1xf32>
    %62 = arith.addf %59, %61 : vector<8x1xf32>
    %c0_53 = arith.constant 0 : index
    %c0_54 = arith.constant 0 : index
    %63 = vector.load %arg4[%c0_53, %c0_54] : memref<8x1xf32, #tpu.memory_space<vmem>>, vector<8x1xf32>
    tpu.vector_store %arg4[%c0_53, %c0_54], %62 {strides = array<i32>} : memref<8x1xf32, #tpu.memory_space<vmem>>, vector<8x1xf32>,
    %c0_55 = arith.constant 0 : index
    %c0_56 = arith.constant 0 : index
    %64 = vector.load %arg5[%c0_55, %c0_56] : memref<8x1xf32, #tpu.memory_space<vmem>>, vector<8x1xf32>
    %65 = arith.mulf %58, %55 : vector<8x512xf32>
    %cst_57 = arith.constant dense<0.000000e+00> : vector<8xf32>
    %66 = vector.multi_reduction <add>, %65, %cst_57 [1] : vector<8x512xf32> to vector<8xf32>
    %67 = vector.shape_cast %66 : vector<8xf32> to vector<8x1xf32>
    %68 = arith.addf %64, %67 : vector<8x1xf32>
    %c0_58 = arith.constant 0 : index
    %c0_59 = arith.constant 0 : index
    %69 = vector.load %arg5[%c0_58, %c0_59] : memref<8x1xf32, #tpu.memory_space<vmem>>, vector<8x1xf32>
    tpu.vector_store %arg5[%c0_58, %c0_59], %68 {strides = array<i32>} : memref<8x1xf32, #tpu.memory_space<vmem>>, vector<8x1xf32>,
    return
  }
  func.func @transform_0(%arg0: i32) -> (i32, i32, i32) {
    %c0_i32 = arith.constant 0 : i32
    %c0_i32_0 = arith.constant 0 : i32
    %c0_i32_1 = arith.constant 0 : i32
    return %arg0, %c0_i32, %c0_i32_0 : i32, i32, i32
  }
  func.func @transform_1(%arg0: i32) -> (i32, i32, i32) {
    %c0_i32 = arith.constant 0 : i32
    %c0_i32_0 = arith.constant 0 : i32
    %c0_i32_1 = arith.constant 0 : i32
    %c0_i32_2 = arith.constant 0 : i32
    return %c0_i32, %c0_i32_0, %c0_i32_1 : i32, i32, i32
  }
  func.func @transform_2(%arg0: i32) -> (i32, i32) {
    %c0_i32 = arith.constant 0 : i32
    %c0_i32_0 = arith.constant 0 : i32
    %c0_i32_1 = arith.constant 0 : i32
    return %c0_i32, %c0_i32_0 : i32, i32
  }
  func.func @transform_3(%arg0: i32) -> (i32, i32) {
    %c0_i32 = arith.constant 0 : i32
    %c0_i32_0 = arith.constant 0 : i32
    %c0_i32_1 = arith.constant 0 : i32
    return %c0_i32, %c0_i32_0 : i32, i32
  }
  func.func @transform_4(%arg0: i32) -> (i32, i32) {
    %c0_i32 = arith.constant 0 : i32
    %c0_i32_0 = arith.constant 0 : i32
    %c0_i32_1 = arith.constant 0 : i32
    return %c0_i32, %c0_i32_0 : i32, i32
  }
}

</mosaic_0001>

<llo_original>
// kernel: tpu_custom_call.1
$region0: #{tpu_custom_call.1}
  #allocation0 [shape = 'u32[]', space=smem, size = 0x4, offset = 0x4, fixed_abs, tag = 'smem constant byte address 0x4 - core index']
  #allocation1 [shape = 'u32[144,128]{1,0:T(1,128)}', space=vmem, size = 0x12000, scoped, tag = 'internal scratch']
  %s0 = inlined_call_operand.vmem [shape: bf16[2,4,640], index: 0, kind: input, shape index: {}]
  %s1 = inlined_call_operand.vmem [shape: bf16[9,8,4], index: 1, kind: input, shape index: {}]
  %s2 = inlined_call_operand.vmem [shape: f32[1,512], index: 2, kind: input, shape index: {}]
  %s3 = inlined_call_operand.vmem [shape: f32[8,1], index: 3, kind: output, shape index: {0}]
  %s4 = inlined_call_operand.vmem [shape: f32[8,1], index: 4, kind: output, shape index: {1}]
  %5 = xla_tuple %s3, %s4
  %s6 = sld [smem:[#allocation0]]
  $region57: #{tpu_custom_call.1} parent=0
    _
  %s8 = ssub.s32 1, %s6
  %s9 = scalar_select 0, %s8, %s6
  loop: start=0, step=1, limit=4
  $region2: #{tpu_custom_call.1} parent=0 // loop_pre_header
    _
  $region3: #{tpu_custom_call.1} parent=0 // loop_header
    %s11 = sphi 0, %s15
    %p12 = scmp.ge.s32.totalorder %s11, 4
    %s21 = sphi 0, %s23
    %s24 = sphi 0, %s21
    %s25 = sphi 0, %s24
    %s41 = sphi 0, %s25
    %s45 = sphi 0, %s45
    %s47 = sphi 0, %s45
    %s48 = sphi 0, %s47
    %s62 = sphi 0, %s48
    %s66 = sphi 0, %s66
    %s68 = sphi 0, %s66
    %s69 = sphi 0, %s68
    %s83 = sphi 0, %s69
    %s87 = sphi 0, %s87
    %s89 = sphi 0, %s87
    %s90 = sphi 0, %s89
    %s104 = sphi 0, %s90
    %s108 = sphi 0, %s108
    %s110 = sphi 0, %s108
    %s111 = sphi 0, %s110
    %s125 = sphi 0, %s111
  $region4: #{tpu_custom_call.1} parent=0 // loop_header_branch
    %14 = sbr.rel (%p12) target = $region8
  $region5: #{tpu_custom_call.1} parent=0 // loop_body
    %s16 = ssub.s32 %s11, 1
    %s17 = ssub.s32 %s11, 2
    %s18 = sadd.s32 %s11, 1
    %s19 = ssub.s32 %s11, %s18
    %p20 = scmp.eq.s32.totalorder %s19, 0
    %s22 = sadd.s32 %s21, 1
    %s23 = scalar_select %p20, %s21, %s22
    %p26 = pneg %p20
    %p27 = scmp.eq.s32.totalorder %s11, 1
    %p28 = por %p26, %p27
    %p29 = scmp.ne.s32.totalorder %s21, %s24
    %p30 = scmp.eq.s32.totalorder %s11, 0
    %p31 = por %p29, %p30
    %p32 = scmp.ne.s32.totalorder %s21, %s24
    %p33 = scmp.eq.s32.totalorder %s16, 1
    %p34 = por %p32, %p33
    %p35 = scmp.ne.s32.totalorder %s24, %s25
    %p36 = scmp.eq.s32.totalorder %s16, 0
    %p37 = por %p35, %p36
    %p38 = scmp.ne.s32.totalorder %s24, %s25
    %p39 = scmp.eq.s32.totalorder %s17, 1
    %p40 = por %p38, %p39
    %p42 = scmp.ne.s32.totalorder %s25, %s41
    %p43 = scmp.eq.s32.totalorder %s17, 0
    %p44 = por %p42, %p43
    %s46 = sadd.s32 %s45, 1
    %p49 = scmp.eq.s32.totalorder %s11, 1
    %p50 = scmp.ne.s32.totalorder %s45, %s47
    %p51 = scmp.eq.s32.totalorder %s11, 0
    %p52 = por %p50, %p51
    %p53 = scmp.ne.s32.totalorder %s45, %s47
    %p54 = scmp.eq.s32.totalorder %s16, 1
    %p55 = por %p53, %p54
    %p56 = scmp.ne.s32.totalorder %s47, %s48
    %p57 = scmp.eq.s32.totalorder %s16, 0
    %p58 = por %p56, %p57
    %p59 = scmp.ne.s32.totalorder %s47, %s48
    %p60 = scmp.eq.s32.totalorder %s17, 1
    %p61 = por %p59, %p60
    %p63 = scmp.ne.s32.totalorder %s48, %s62
    %p64 = scmp.eq.s32.totalorder %s17, 0
    %p65 = por %p63, %p64
    %s67 = sadd.s32 %s66, 1
    %p70 = scmp.eq.s32.totalorder %s11, 1
    %p71 = scmp.ne.s32.totalorder %s66, %s68
    %p72 = scmp.eq.s32.totalorder %s11, 0
    %p73 = por %p71, %p72
    %p74 = scmp.ne.s32.totalorder %s66, %s68
    %p75 = scmp.eq.s32.totalorder %s16, 1
    %p76 = por %p74, %p75
    %p77 = scmp.ne.s32.totalorder %s68, %s69
    %p78 = scmp.eq.s32.totalorder %s16, 0
    %p79 = por %p77, %p78
    %p80 = scmp.ne.s32.totalorder %s68, %s69
    %p81 = scmp.eq.s32.totalorder %s17, 1
    %p82 = por %p80, %p81
    %p84 = scmp.ne.s32.totalorder %s69, %s83
    %p85 = scmp.eq.s32.totalorder %s17, 0
    %p86 = por %p84, %p85
    %s88 = sadd.s32 %s87, 1
    %p91 = scmp.eq.s32.totalorder %s11, 1
    %p92 = scmp.ne.s32.totalorder %s87, %s89
    %p93 = scmp.eq.s32.totalorder %s11, 0
    %p94 = por %p92, %p93
    %p95 = scmp.ne.s32.totalorder %s87, %s89
    %p96 = scmp.eq.s32.totalorder %s16, 1
    %p97 = por %p95, %p96
    %p98 = scmp.ne.s32.totalorder %s89, %s90
    %p99 = scmp.eq.s32.totalorder %s16, 0
    %p100 = por %p98, %p99
    %p101 = scmp.ne.s32.totalorder %s89, %s90
    %p102 = scmp.eq.s32.totalorder %s17, 1
    %p103 = por %p101, %p102
    %p105 = scmp.ne.s32.totalorder %s90, %s104
    %p106 = scmp.eq.s32.totalorder %s17, 0
    %p107 = por %p105, %p106
    %s109 = sadd.s32 %s108, 1
    %p112 = scmp.eq.s32.totalorder %s11, 1
    %p113 = scmp.ne.s32.totalorder %s108, %s110
    %p114 = scmp.eq.s32.totalorder %s11, 0
    %p115 = por %p113, %p114
    %p116 = scmp.ne.s32.totalorder %s108, %s110
    %p117 = scmp.eq.s32.totalorder %s16, 1
    %p118 = por %p116, %p117
    %p119 = scmp.ne.s32.totalorder %s110, %s111
    %p120 = scmp.eq.s32.totalorder %s16, 0
    %p121 = por %p119, %p120
    %p122 = scmp.ne.s32.totalorder %s110, %s111
    %p123 = scmp.eq.s32.totalorder %s17, 1
    %p124 = por %p122, %p123
    %p126 = scmp.ne.s32.totalorder %s111, %s125
    %p127 = scmp.eq.s32.totalorder %s17, 0
    %p128 = por %p126, %p127
    %p129 = scmp.le.s32.totalorder 1, %s11
    %p130 = scmp.lt.s32.totalorder %s11, 3
    %p131 = pnand %p129, %p130
    %p132 = pneg %p131
    // Predicated region
    $region9: #{tpu_custom_call.1} parent=5 // pred_check
      _
    $region10: #{tpu_custom_call.1} parent=5 // pred_check_branch
      %134 = sbr.rel (%p131) target = $region12
    $region11: #{tpu_custom_call.1} parent=5 // pred_region
      %s135 = ssub.s32 %s11, 1
      // Predicated region
      $region13: #{tpu_custom_call.1} parent=11 // pred_check
        %p136 = pneg %p58
      $region14: #{tpu_custom_call.1} parent=11 // pred_check_branch
        %138 = sbr.rel (%p136) target = $region16
      $region15: #{tpu_custom_call.1} parent=11 // pred_region
        _
      $region16: #{tpu_custom_call.1} parent=11 // pred_fallthru
        _
      // Predicated region
      $region17: #{tpu_custom_call.1} parent=11 // pred_check
        %p139 = pneg %p79
      $region18: #{tpu_custom_call.1} parent=11 // pred_check_branch
        %141 = sbr.rel (%p139) target = $region20
      $region19: #{tpu_custom_call.1} parent=11 // pred_region
        _
      $region20: #{tpu_custom_call.1} parent=11 // pred_fallthru
        _
    $region12: #{tpu_custom_call.1} parent=5 // pred_fallthru
      _
    %p142 = scmp.lt.s32.totalorder %s11, 2
    // Predicated region
    $region21: #{tpu_custom_call.1} parent=5 // pred_check
      %p143 = pneg %p142
    $region22: #{tpu_custom_call.1} parent=5 // pred_check_branch
      %145 = sbr.rel (%p143) target = $region24
    $region23: #{tpu_custom_call.1} parent=5 // pred_region
      // Predicated region
      $region25: #{tpu_custom_call.1} parent=23 // pred_check
        %p146 = pneg %p31
      $region26: #{tpu_custom_call.1} parent=23 // pred_check_branch
        %148 = sbr.rel (%p146) target = $region28
      $region27: #{tpu_custom_call.1} parent=23 // pred_region
        %p149 = scmp.lt.s32.totalorder %s11, 1
        %s150 = scalar_select %p149, %s11, 1
        %s151 = smul.addr %s150, 5
        %s152 = smul.addr %s151, 2
        %s153 = scalar_lea.vmem %s0, %s152
      $region28: #{tpu_custom_call.1} parent=23 // pred_fallthru
        _
    $region24: #{tpu_custom_call.1} parent=5 // pred_fallthru
      _
    %p154 = scmp.le.s32.totalorder 1, %s11
    %p155 = scmp.lt.s32.totalorder %s11, 3
    %p156 = pnand %p154, %p155
    %p157 = pneg %p156
    // Predicated region
    $region29: #{tpu_custom_call.1} parent=5 // pred_check
      _
    $region30: #{tpu_custom_call.1} parent=5 // pred_check_branch
      %159 = sbr.rel (%p156) target = $region32
    $region31: #{tpu_custom_call.1} parent=5 // pred_region
      %s160 = ssub.s32 %s11, 1
      %p161 = scmp.lt.s32.totalorder %s16, 1
      %s162 = scalar_select %p161, %s16, 1
      %s163 = smul.addr %s162, 5
      %s164 = smul.addr %s163, 2
      %s165 = scalar_lea.vmem %s0, %s164
      %p166 = pneg %p37
      %p167 = pneg %p34
      %p168 = pneg %p58
      %p169 = pneg %p55
      %p170 = pneg %p79
      %p171 = pneg %p76
      %p172 = pneg %p100
      %p173 = pneg %p97
      %p174 = pneg %p121
      %p175 = pneg %p118
      %p176 = scmp.lt.s32.totalorder %s16, 1
      %s177 = scalar_select %p176, %s16, 1
      %s178 = smul.addr %s177, 5
      %s179 = smul.addr %s178, 2
      %s180 = scalar_lea.vmem %s0, %s179
      %p182 = scmp.eq.s32.totalorder %s16, 0
      // Predicated region
      $region33: #{tpu_custom_call.1} parent=31 // pred_check
        %p183 = pneg %p182
      $region34: #{tpu_custom_call.1} parent=31 // pred_check_branch
        %185 = sbr.rel (%p183) target = $region36
      $region35: #{tpu_custom_call.1} parent=31 // pred_region
        %vm186 = vcmask 7168
        %187 = vst.msk [vmem:[%s3] sm:$0xff] %vm186, 0.0
        %188 = vst.msk [vmem:[%s4] sm:$0xff] %vm186, 0.0
      $region36: #{tpu_custom_call.1} parent=31 // pred_fallthru
        _
      %v189 = vld [vmem:[%s180] sm:$0xff]
      %v190 = vld [vmem:[%s1] sm:$0xf]
      %v191 = vld [vmem:[%s180] sm:$0xff]
      %v192 = vld [vmem:[%s180 + $0x8] sm:$0x3]
      %s193 = scalar_lea.vmem %s1, 4
      %v194 = vld [vmem:[%s193] sm:$0xf]
      %v197 = vcombine.high %v191, %v191
      %v199 = vunpack.c.l.s4 1983009808
      %v200 = vunpack.c.0.s8 %v199
      %v201 = vlaneseq
      %v202 = vshrl.u32 %v201, 7
      %v203 = vsub.s32 %v200, %v202
      %v204 = vrot.slane %v191, %v203
      %v206 = vunpack.c.l.s4 1983009808
      %v207 = vunpack.c.0.s8 %v206
      %v208 = vlaneseq
      %v209 = vshrl.u32 %v208, 7
      %v210 = vsub.s32 %v207, %v209
      %v211 = vrot.slane %v197, %v210
      %v212 = vcombine.high %v204, %v204
      %v213 = vcombine.high %v211, %v211
      %v215 = vunpack.c.l.s4 1983009808
      %v216 = vunpack.c.0.s8 %v215
      %v217 = vlaneseq
      %v218 = vshrl.u32 %v217, 7
      %v219 = vsub.s32 %v216, %v218
      %v220 = vrot.slane %v192, %v219
      %221 = vrot.lane.b32.xlu0 %v204, 127
      %v222 = vpop.permute.xlu0 %221
      %223 = vrot.lane.b32.xlu0 %v212, 127
      %v224 = vpop.permute.xlu0 %223
      %225 = vrot.lane.b32.xlu0 %v211, 127
      %v226 = vpop.permute.xlu0 %225
      %227 = vrot.lane.b32.xlu0 %v213, 127
      %v228 = vpop.permute.xlu0 %227
      %229 = vrot.lane.b32.xlu0 %v220, 127
      %v230 = vpop.permute.xlu0 %229
      %vm231 = vcmask 1039360
      %v232 = vsel %vm231, %v222, %v224
      %v233 = vsel %vm231, %v224, %v226
      %v234 = vsel %vm231, %v226, %v228
      %v235 = vsel %vm231, %v228, %v230
      %vm236 = vcmask 31744
      %v238 = vsel %vm236, %v194, 0
      %vm240 = vcmask 1041408
      %v242 = vsel %vm240, %v232, 0
      %v245 = vsel %vm240, %v233, 0
      %v248 = vsel %vm240, %v234, 0
      %v251 = vsel %vm240, %v235, 0
      %253 = vmatprep.subr.bf16.mxu0 %v245
      %254 = vmatpush1.bf16.msra.mxu0 %v242
      %255 = vmatprep.subr.bf16.mxu0 0
      %256 = vmatpush1.bf16.msra.mxu0 0
      %257 = vmatprep.subr.bf16.mxu0 0
      %258 = vmatpush1.bf16.msra.mxu0 0
      %259 = vmatprep.subr.bf16.mxu0 0
      %260 = vmatpush1.bf16.msra.mxu0 0
      %261 = vmatprep.subr.bf16.mxu0 0
      %262 = vmatpush1.bf16.msra.mxu0 0
      %263 = vmatprep.subr.bf16.mxu0 0
      %264 = vmatpush1.bf16.msra.mxu0 0
      %265 = vmatprep.subr.bf16.mxu0 0
      %266 = vmatpush1.bf16.msra.mxu0 0
      %267 = vmatprep.subr.bf16.mxu0 0
      %268 = vmatpush1.bf16.msra.mxu0 0
      %269 = vmatprep.subr.bf16.mxu0 0
      %270 = vmatpush1.bf16.msra.mxu0 0
      %271 = vmatprep.subr.bf16.mxu0 0
      %272 = vmatpush1.bf16.msra.mxu0 0
      %273 = vmatprep.subr.bf16.mxu0 0
      %274 = vmatpush1.bf16.msra.mxu0 0
      %275 = vmatprep.subr.bf16.mxu0 0
      %276 = vmatpush1.bf16.msra.mxu0 0
      %277 = vmatprep.subr.bf16.mxu0 0
      %278 = vmatpush1.bf16.msra.mxu0 0
      %279 = vmatprep.subr.bf16.mxu0 0
      %280 = vmatpush1.bf16.msra.mxu0 0
      %281 = vmatprep.subr.bf16.mxu0 0
      %282 = vmatpush1.bf16.msra.mxu0 0
      %283 = vmatprep.subr.bf16.mxu0 0
      %284 = vmatpush1.bf16.msra.mxu0 0
      %285 = vmatprep.mubr.bf16.mxu0 0
      %286 = vmatmul.mubr.bf16.gmra.mrb[0].mxu0 %v238
      %v287 = vpop.f32.mrb[0].mxu0
      %v288 = vadd.f32 0.0, %v287
      %v289 = vpop.f32.mrb[0].mxu0
      %v290 = vadd.f32 0.0, %v289
      %v291 = vpop.f32.mrb[0].mxu0
      %v292 = vpop.f32.mrb[0].mxu0
      %293 = vdwg.mxu0
      %294 = vmatprep.subr.bf16.mxu0 %v251
      %295 = vmatpush1.bf16.msra.mxu0 %v248
      %296 = vmatprep.subr.bf16.mxu0 0
      %297 = vmatpush1.bf16.msra.mxu0 0
      %298 = vmatprep.subr.bf16.mxu0 0
      %299 = vmatpush1.bf16.msra.mxu0 0
      %300 = vmatprep.subr.bf16.mxu0 0
      %301 = vmatpush1.bf16.msra.mxu0 0
      %302 = vmatprep.subr.bf16.mxu0 0
      %303 = vmatpush1.bf16.msra.mxu0 0
      %304 = vmatprep.subr.bf16.mxu0 0
      %305 = vmatpush1.bf16.msra.mxu0 0
      %306 = vmatprep.subr.bf16.mxu0 0
      %307 = vmatpush1.bf16.msra.mxu0 0
      %308 = vmatprep.subr.bf16.mxu0 0
      %309 = vmatpush1.bf16.msra.mxu0 0
      %310 = vmatprep.subr.bf16.mxu0 0
      %311 = vmatpush1.bf16.msra.mxu0 0
      %312 = vmatprep.subr.bf16.mxu0 0
      %313 = vmatpush1.bf16.msra.mxu0 0
      %314 = vmatprep.subr.bf16.mxu0 0
      %315 = vmatpush1.bf16.msra.mxu0 0
      %316 = vmatprep.subr.bf16.mxu0 0
      %317 = vmatpush1.bf16.msra.mxu0 0
      %318 = vmatprep.subr.bf16.mxu0 0
      %319 = vmatpush1.bf16.msra.mxu0 0
      %320 = vmatprep.subr.bf16.mxu0 0
      %321 = vmatpush1.bf16.msra.mxu0 0
      %322 = vmatprep.subr.bf16.mxu0 0
      %323 = vmatpush1.bf16.msra.mxu0 0
      %324 = vmatprep.subr.bf16.mxu0 0
      %325 = vmatpush1.bf16.msra.mxu0 0
      %326 = vmatprep.mubr.bf16.mxu0 0
      %327 = vmatmul.mubr.bf16.gmra.mrb[0].mxu0 %v238
      %v328 = vpop.f32.mrb[0].mxu0
      %v329 = vadd.f32 0.0, %v328
      %v330 = vpop.f32.mrb[0].mxu0
      %v331 = vadd.f32 0.0, %v330
      %v332 = vpop.f32.mrb[0].mxu0
      %v333 = vpop.f32.mrb[0].mxu0
      %334 = vdwg.mxu0
      %v336 = vcombine.high %v189, %v189
      %v338 = vunpack.c.l.s4 1983009808
      %v339 = vunpack.c.0.s8 %v338
      %v340 = vlaneseq
      %v341 = vshrl.u32 %v340, 7
      %v342 = vsub.s32 %v339, %v341
      %v343 = vrot.slane %v189, %v342
      %v345 = vunpack.c.l.s4 1983009808
      %v346 = vunpack.c.0.s8 %v345
      %v347 = vlaneseq
      %v348 = vshrl.u32 %v347, 7
      %v349 = vsub.s32 %v346, %v348
      %v350 = vrot.slane %v336, %v349
      %v351 = vcombine.high %v343, %v343
      %v352 = vcombine.high %v350, %v350
      %v354 = vsel %vm236, %v190, 0
      %v357 = vsel %vm240, %v343, 0
      %v360 = vsel %vm240, %v351, 0
      %v363 = vsel %vm240, %v350, 0
      %v366 = vsel %vm240, %v352, 0
      %368 = vmatprep.subr.bf16.mxu0 %v360
      %369 = vmatpush1.bf16.msra.mxu0 %v357
      %370 = vmatprep.subr.bf16.mxu0 0
      %371 = vmatpush1.bf16.msra.mxu0 0
      %372 = vmatprep.subr.bf16.mxu0 0
      %373 = vmatpush1.bf16.msra.mxu0 0
      %374 = vmatprep.subr.bf16.mxu0 0
      %375 = vmatpush1.bf16.msra.mxu0 0
      %376 = vmatprep.subr.bf16.mxu0 0
      %377 = vmatpush1.bf16.msra.mxu0 0
      %378 = vmatprep.subr.bf16.mxu0 0
      %379 = vmatpush1.bf16.msra.mxu0 0
      %380 = vmatprep.subr.bf16.mxu0 0
      %381 = vmatpush1.bf16.msra.mxu0 0
      %382 = vmatprep.subr.bf16.mxu0 0
      %383 = vmatpush1.bf16.msra.mxu0 0
      %384 = vmatprep.subr.bf16.mxu0 0
      %385 = vmatpush1.bf16.msra.mxu0 0
      %386 = vmatprep.subr.bf16.mxu0 0
      %387 = vmatpush1.bf16.msra.mxu0 0
      %388 = vmatprep.subr.bf16.mxu0 0
      %389 = vmatpush1.bf16.msra.mxu0 0
      %390 = vmatprep.subr.bf16.mxu0 0
      %391 = vmatpush1.bf16.msra.mxu0 0
      %392 = vmatprep.subr.bf16.mxu0 0
      %393 = vmatpush1.bf16.msra.mxu0 0
      %394 = vmatprep.subr.bf16.mxu0 0
      %395 = vmatpush1.bf16.msra.mxu0 0
      %396 = vmatprep.subr.bf16.mxu0 0
      %397 = vmatpush1.bf16.msra.mxu0 0
      %398 = vmatprep.subr.bf16.mxu0 0
      %399 = vmatpush1.bf16.msra.mxu0 0
      %400 = vmatprep.mubr.bf16.mxu0 0
      %401 = vmatmul.mubr.bf16.gmra.mrb[0].mxu0 %v354
      %v402 = vpop.f32.mrb[0].mxu0
      %v403 = vadd.f32 %v288, %v402
      %v404 = vpop.f32.mrb[0].mxu0
      %v405 = vadd.f32 %v290, %v404
      %v406 = vpop.f32.mrb[0].mxu0
      %v407 = vpop.f32.mrb[0].mxu0
      %408 = vdwg.mxu0
      %409 = vmatprep.subr.bf16.mxu0 %v366
      %410 = vmatpush1.bf16.msra.mxu0 %v363
      %411 = vmatprep.subr.bf16.mxu0 0
      %412 = vmatpush1.bf16.msra.mxu0 0
      %413 = vmatprep.subr.bf16.mxu0 0
      %414 = vmatpush1.bf16.msra.mxu0 0
      %415 = vmatprep.subr.bf16.mxu0 0
      %416 = vmatpush1.bf16.msra.mxu0 0
      %417 = vmatprep.subr.bf16.mxu0 0
      %418 = vmatpush1.bf16.msra.mxu0 0
      %419 = vmatprep.subr.bf16.mxu0 0
      %420 = vmatpush1.bf16.msra.mxu0 0
      %421 = vmatprep.subr.bf16.mxu0 0
      %422 = vmatpush1.bf16.msra.mxu0 0
      %423 = vmatprep.subr.bf16.mxu0 0
      %424 = vmatpush1.bf16.msra.mxu0 0
      %425 = vmatprep.subr.bf16.mxu0 0
      %426 = vmatpush1.bf16.msra.mxu0 0
      %427 = vmatprep.subr.bf16.mxu0 0
      %428 = vmatpush1.bf16.msra.mxu0 0
      %429 = vmatprep.subr.bf16.mxu0 0
      %430 = vmatpush1.bf16.msra.mxu0 0
      %431 = vmatprep.subr.bf16.mxu0 0
      %432 = vmatpush1.bf16.msra.mxu0 0
      %433 = vmatprep.subr.bf16.mxu0 0
      %434 = vmatpush1.bf16.msra.mxu0 0
      %435 = vmatprep.subr.bf16.mxu0 0
      %436 = vmatpush1.bf16.msra.mxu0 0
      %437 = vmatprep.subr.bf16.mxu0 0
      %438 = vmatpush1.bf16.msra.mxu0 0
      %439 = vmatprep.subr.bf16.mxu0 0
      %440 = vmatpush1.bf16.msra.mxu0 0
      %441 = vmatprep.mubr.bf16.mxu0 0
      %442 = vmatmul.mubr.bf16.gmra.mrb[0].mxu0 %v354
      %v443 = vpop.f32.mrb[0].mxu0
      %v444 = vadd.f32 %v329, %v443
      %v445 = vpop.f32.mrb[0].mxu0
      %v446 = vadd.f32 %v331, %v445
      %v447 = vpop.f32.mrb[0].mxu0
      %v448 = vpop.f32.mrb[0].mxu0
      %449 = vdwg.mxu0
      %v450 = vld [vmem:[%s180] sm:$0xff]
      %v451 = vld [vmem:[%s180 + $0x8] sm:$0x3]
      %s452 = scalar_lea.vmem %s1, 8
      %v453 = vld [vmem:[%s452] sm:$0xf]
      %v456 = vcombine.high %v450, %v450
      %v458 = vunpack.c.l.s4 1983009808
      %v459 = vunpack.c.0.s8 %v458
      %v460 = vlaneseq
      %v461 = vshrl.u32 %v460, 7
      %v462 = vsub.s32 %v459, %v461
      %v463 = vrot.slane %v450, %v462
      %v465 = vunpack.c.l.s4 1983009808
      %v466 = vunpack.c.0.s8 %v465
      %v467 = vlaneseq
      %v468 = vshrl.u32 %v467, 7
      %v469 = vsub.s32 %v466, %v468
      %v470 = vrot.slane %v456, %v469
      %v471 = vcombine.high %v463, %v463
      %v472 = vcombine.high %v470, %v470
      %v474 = vunpack.c.l.s4 1983009808
      %v475 = vunpack.c.0.s8 %v474
      %v476 = vlaneseq
      %v477 = vshrl.u32 %v476, 7
      %v478 = vsub.s32 %v475, %v477
      %v479 = vrot.slane %v451, %v478
      %480 = vrot.lane.b32.xlu0 %v463, 126
      %v481 = vpop.permute.xlu0 %480
      %482 = vrot.lane.b32.xlu0 %v471, 126
      %v483 = vpop.permute.xlu0 %482
      %484 = vrot.lane.b32.xlu0 %v470, 126
      %v485 = vpop.permute.xlu0 %484
      %486 = vrot.lane.b32.xlu0 %v472, 126
      %v487 = vpop.permute.xlu0 %486
      %488 = vrot.lane.b32.xlu0 %v479, 126
      %v489 = vpop.permute.xlu0 %488
      %vm490 = vcmask 1031168
      %v491 = vsel %vm490, %v481, %v483
      %v492 = vsel %vm490, %v483, %v485
      %v493 = vsel %vm490, %v485, %v487
      %v494 = vsel %vm490, %v487, %v489
      %v496 = vsel %vm236, %v453, 0
      %v499 = vsel %vm240, %v491, 0
      %v502 = vsel %vm240, %v492, 0
      %v505 = vsel %vm240, %v493, 0
      %v508 = vsel %vm240, %v494, 0
      %510 = vmatprep.subr.bf16.mxu0 %v502
      %511 = vmatpush1.bf16.msra.mxu0 %v499
      %512 = vmatprep.subr.bf16.mxu0 0
      %513 = vmatpush1.bf16.msra.mxu0 0
      %514 = vmatprep.subr.bf16.mxu0 0
      %515 = vmatpush1.bf16.msra.mxu0 0
      %516 = vmatprep.subr.bf16.mxu0 0
      %517 = vmatpush1.bf16.msra.mxu0 0
      %518 = vmatprep.subr.bf16.mxu0 0
      %519 = vmatpush1.bf16.msra.mxu0 0
      %520 = vmatprep.subr.bf16.mxu0 0
      %521 = vmatpush1.bf16.msra.mxu0 0
      %522 = vmatprep.subr.bf16.mxu0 0
      %523 = vmatpush1.bf16.msra.mxu0 0
      %524 = vmatprep.subr.bf16.mxu0 0
      %525 = vmatpush1.bf16.msra.mxu0 0
      %526 = vmatprep.subr.bf16.mxu0 0
      %527 = vmatpush1.bf16.msra.mxu0 0
      %528 = vmatprep.subr.bf16.mxu0 0
      %529 = vmatpush1.bf16.msra.mxu0 0
      %530 = vmatprep.subr.bf16.mxu0 0
      %531 = vmatpush1.bf16.msra.mxu0 0
      %532 = vmatprep.subr.bf16.mxu0 0
      %533 = vmatpush1.bf16.msra.mxu0 0
      %534 = vmatprep.subr.bf16.mxu0 0
      %535 = vmatpush1.bf16.msra.mxu0 0
      %536 = vmatprep.subr.bf16.mxu0 0
      %537 = vmatpush1.bf16.msra.mxu0 0
      %538 = vmatprep.subr.bf16.mxu0 0
      %539 = vmatpush1.bf16.msra.mxu0 0
      %540 = vmatprep.subr.bf16.mxu0 0
      %541 = vmatpush1.bf16.msra.mxu0 0
      %542 = vmatprep.mubr.bf16.mxu0 0
      %543 = vmatmul.mubr.bf16.gmra.mrb[0].mxu0 %v496
      %v544 = vpop.f32.mrb[0].mxu0
      %v545 = vadd.f32 0.0, %v544
      %v546 = vpop.f32.mrb[0].mxu0
      %v547 = vadd.f32 0.0, %v546
      %v548 = vpop.f32.mrb[0].mxu0
      %v549 = vpop.f32.mrb[0].mxu0
      %550 = vdwg.mxu0
      %551 = vmatprep.subr.bf16.mxu0 %v508
      %552 = vmatpush1.bf16.msra.mxu0 %v505
      %553 = vmatprep.subr.bf16.mxu0 0
      %554 = vmatpush1.bf16.msra.mxu0 0
      %555 = vmatprep.subr.bf16.mxu0 0
      %556 = vmatpush1.bf16.msra.mxu0 0
      %557 = vmatprep.subr.bf16.mxu0 0
      %558 = vmatpush1.bf16.msra.mxu0 0
      %559 = vmatprep.subr.bf16.mxu0 0
      %560 = vmatpush1.bf16.msra.mxu0 0
      %561 = vmatprep.subr.bf16.mxu0 0
      %562 = vmatpush1.bf16.msra.mxu0 0
      %563 = vmatprep.subr.bf16.mxu0 0
      %564 = vmatpush1.bf16.msra.mxu0 0
      %565 = vmatprep.subr.bf16.mxu0 0
      %566 = vmatpush1.bf16.msra.mxu0 0
      %567 = vmatprep.subr.bf16.mxu0 0
      %568 = vmatpush1.bf16.msra.mxu0 0
      %569 = vmatprep.subr.bf16.mxu0 0
      %570 = vmatpush1.bf16.msra.mxu0 0
      %571 = vmatprep.subr.bf16.mxu0 0
      %572 = vmatpush1.bf16.msra.mxu0 0
      %573 = vmatprep.subr.bf16.mxu0 0
      %574 = vmatpush1.bf16.msra.mxu0 0
      %575 = vmatprep.subr.bf16.mxu0 0
      %576 = vmatpush1.bf16.msra.mxu0 0
      %577 = vmatprep.subr.bf16.mxu0 0
      %578 = vmatpush1.bf16.msra.mxu0 0
      %579 = vmatprep.subr.bf16.mxu0 0
      %580 = vmatpush1.bf16.msra.mxu0 0
      %581 = vmatprep.subr.bf16.mxu0 0
      %582 = vmatpush1.bf16.msra.mxu0 0
      %583 = vmatprep.mubr.bf16.mxu0 0
      %584 = vmatmul.mubr.bf16.gmra.mrb[0].mxu0 %v496
      %v585 = vpop.f32.mrb[0].mxu0
      %v586 = vadd.f32 0.0, %v585
      %v587 = vpop.f32.mrb[0].mxu0
      %v588 = vadd.f32 0.0, %v587
      %v589 = vpop.f32.mrb[0].mxu0
      %v590 = vpop.f32.mrb[0].mxu0
      %591 = vdwg.mxu0
      %v592 = vadd.f32 %v403, %v545
      %v593 = vadd.f32 %v405, %v547
      %v594 = vadd.f32 %v444, %v586
      %v595 = vadd.f32 %v446, %v588
      %v596 = vld [vmem:[%s180] sm:$0xff]
      %v597 = vld [vmem:[%s180 + $0x8] sm:$0x3]
      %s598 = scalar_lea.vmem %s1, 12
      %v599 = vld [vmem:[%s598] sm:$0xf]
      %v602 = vcombine.high %v596, %v596
      %v604 = vunpack.c.l.s4 1983009808
      %v605 = vunpack.c.0.s8 %v604
      %v606 = vlaneseq
      %v607 = vshrl.u32 %v606, 7
      %v608 = vsub.s32 %v605, %v607
      %v609 = vrot.slane %v596, %v608
      %v611 = vunpack.c.l.s4 1983009808
      %v612 = vunpack.c.0.s8 %v611
      %v613 = vlaneseq
      %v614 = vshrl.u32 %v613, 7
      %v615 = vsub.s32 %v612, %v614
      %v616 = vrot.slane %v602, %v615
      %v617 = vcombine.high %v609, %v609
      %v618 = vcombine.high %v616, %v616
      %v620 = vunpack.c.l.s4 1983009808
      %v621 = vunpack.c.0.s8 %v620
      %v622 = vlaneseq
      %v623 = vshrl.u32 %v622, 7
      %v624 = vsub.s32 %v621, %v623
      %v625 = vrot.slane %v597, %v624
      %626 = vrot.lane.b32.xlu0 %v609, 110
      %v627 = vpop.permute.xlu0 %626
      %628 = vrot.lane.b32.xlu0 %v617, 110
      %v629 = vpop.permute.xlu0 %628
      %630 = vrot.lane.b32.xlu0 %v616, 110
      %v631 = vpop.permute.xlu0 %630
      %632 = vrot.lane.b32.xlu0 %v618, 110
      %v633 = vpop.permute.xlu0 %632
      %634 = vrot.lane.b32.xlu0 %v625, 110
      %v635 = vpop.permute.xlu0 %634
      %vm636 = vcmask 900096
      %v637 = vsel %vm636, %v627, %v629
      %v638 = vsel %vm636, %v629, %v631
      %v639 = vsel %vm636, %v631, %v633
      %v640 = vsel %vm636, %v633, %v635
      %v642 = vsel %vm236, %v599, 0
      %v645 = vsel %vm240, %v637, 0
      %v648 = vsel %vm240, %v638, 0
      %v651 = vsel %vm240, %v639, 0
      %v654 = vsel %vm240, %v640, 0
      %656 = vmatprep.subr.bf16.mxu0 %v648
      %657 = vmatpush1.bf16.msra.mxu0 %v645
      %658 = vmatprep.subr.bf16.mxu0 0
      %659 = vmatpush1.bf16.msra.mxu0 0
      %660 = vmatprep.subr.bf16.mxu0 0
      %661 = vmatpush1.bf16.msra.mxu0 0
      %662 = vmatprep.subr.bf16.mxu0 0
      %663 = vmatpush1.bf16.msra.mxu0 0
      %664 = vmatprep.subr.bf16.mxu0 0
      %665 = vmatpush1.bf16.msra.mxu0 0
      %666 = vmatprep.subr.bf16.mxu0 0
      %667 = vmatpush1.bf16.msra.mxu0 0
      %668 = vmatprep.subr.bf16.mxu0 0
      %669 = vmatpush1.bf16.msra.mxu0 0
      %670 = vmatprep.subr.bf16.mxu0 0
      %671 = vmatpush1.bf16.msra.mxu0 0
      %672 = vmatprep.subr.bf16.mxu0 0
      %673 = vmatpush1.bf16.msra.mxu0 0
      %674 = vmatprep.subr.bf16.mxu0 0
      %675 = vmatpush1.bf16.msra.mxu0 0
      %676 = vmatprep.subr.bf16.mxu0 0
      %677 = vmatpush1.bf16.msra.mxu0 0
      %678 = vmatprep.subr.bf16.mxu0 0
      %679 = vmatpush1.bf16.msra.mxu0 0
      %680 = vmatprep.subr.bf16.mxu0 0
      %681 = vmatpush1.bf16.msra.mxu0 0
      %682 = vmatprep.subr.bf16.mxu0 0
      %683 = vmatpush1.bf16.msra.mxu0 0
      %684 = vmatprep.subr.bf16.mxu0 0
      %685 = vmatpush1.bf16.msra.mxu0 0
      %686 = vmatprep.subr.bf16.mxu0 0
      %687 = vmatpush1.bf16.msra.mxu0 0
      %688 = vmatprep.mubr.bf16.mxu0 0
      %689 = vmatmul.mubr.bf16.gmra.mrb[0].mxu0 %v642
      %v690 = vpop.f32.mrb[0].mxu0
      %v691 = vadd.f32 0.0, %v690
      %v692 = vpop.f32.mrb[0].mxu0
      %v693 = vadd.f32 0.0, %v692
      %v694 = vpop.f32.mrb[0].mxu0
      %v695 = vpop.f32.mrb[0].mxu0
      %696 = vdwg.mxu0
      %697 = vmatprep.subr.bf16.mxu0 %v654
      %698 = vmatpush1.bf16.msra.mxu0 %v651
      %699 = vmatprep.subr.bf16.mxu0 0
      %700 = vmatpush1.bf16.msra.mxu0 0
      %701 = vmatprep.subr.bf16.mxu0 0
      %702 = vmatpush1.bf16.msra.mxu0 0
      %703 = vmatprep.subr.bf16.mxu0 0
      %704 = vmatpush1.bf16.msra.mxu0 0
      %705 = vmatprep.subr.bf16.mxu0 0
      %706 = vmatpush1.bf16.msra.mxu0 0
      %707 = vmatprep.subr.bf16.mxu0 0
      %708 = vmatpush1.bf16.msra.mxu0 0
      %709 = vmatprep.subr.bf16.mxu0 0
      %710 = vmatpush1.bf16.msra.mxu0 0
      %711 = vmatprep.subr.bf16.mxu0 0
      %712 = vmatpush1.bf16.msra.mxu0 0
      %713 = vmatprep.subr.bf16.mxu0 0
      %714 = vmatpush1.bf16.msra.mxu0 0
      %715 = vmatprep.subr.bf16.mxu0 0
      %716 = vmatpush1.bf16.msra.mxu0 0
      %717 = vmatprep.subr.bf16.mxu0 0
      %718 = vmatpush1.bf16.msra.mxu0 0
      %719 = vmatprep.subr.bf16.mxu0 0
      %720 = vmatpush1.bf16.msra.mxu0 0
      %721 = vmatprep.subr.bf16.mxu0 0
      %722 = vmatpush1.bf16.msra.mxu0 0
      %723 = vmatprep.subr.bf16.mxu0 0
      %724 = vmatpush1.bf16.msra.mxu0 0
      %725 = vmatprep.subr.bf16.mxu0 0
      %726 = vmatpush1.bf16.msra.mxu0 0
      %727 = vmatprep.subr.bf16.mxu0 0
      %728 = vmatpush1.bf16.msra.mxu0 0
      %729 = vmatprep.mubr.bf16.mxu0 0
      %730 = vmatmul.mubr.bf16.gmra.mrb[0].mxu0 %v642
      %v731 = vpop.f32.mrb[0].mxu0
      %v732 = vadd.f32 0.0, %v731
      %v733 = vpop.f32.mrb[0].mxu0
      %v734 = vadd.f32 0.0, %v733
      %v735 = vpop.f32.mrb[0].mxu0
      %v736 = vpop.f32.mrb[0].mxu0
      %737 = vdwg.mxu0
      %v738 = vadd.f32 %v592, %v691
      %v739 = vadd.f32 %v593, %v693
      %v740 = vadd.f32 %v594, %v732
      %v741 = vadd.f32 %v595, %v734
      %v742 = vld [vmem:[%s180] sm:$0xff]
      %v743 = vld [vmem:[%s180 + $0x8] sm:$0x3]
      %s744 = scalar_lea.vmem %s1, 16
      %v745 = vld [vmem:[%s744] sm:$0xf]
      %v748 = vcombine.high %v742, %v742
      %v750 = vunpack.c.l.s4 1983009808
      %v751 = vunpack.c.0.s8 %v750
      %v752 = vlaneseq
      %v753 = vshrl.u32 %v752, 7
      %v754 = vsub.s32 %v751, %v753
      %v755 = vrot.slane %v742, %v754
      %v757 = vunpack.c.l.s4 1983009808
      %v758 = vunpack.c.0.s8 %v757
      %v759 = vlaneseq
      %v760 = vshrl.u32 %v759, 7
      %v761 = vsub.s32 %v758, %v760
      %v762 = vrot.slane %v748, %v761
      %v763 = vcombine.high %v755, %v755
      %v764 = vcombine.high %v762, %v762
      %v766 = vunpack.c.l.s4 1983009808
      %v767 = vunpack.c.0.s8 %v766
      %v768 = vlaneseq
      %v769 = vshrl.u32 %v768, 7
      %v770 = vsub.s32 %v767, %v769
      %v771 = vrot.slane %v743, %v770
      %772 = vrot.lane.b32.xlu0 %v755, 109
      %v773 = vpop.permute.xlu0 %772
      %774 = vrot.lane.b32.xlu0 %v763, 109
      %v775 = vpop.permute.xlu0 %774
      %776 = vrot.lane.b32.xlu0 %v762, 109
      %v777 = vpop.permute.xlu0 %776
      %778 = vrot.lane.b32.xlu0 %v764, 109
      %v779 = vpop.permute.xlu0 %778
      %780 = vrot.lane.b32.xlu0 %v771, 109
      %v781 = vpop.permute.xlu0 %780
      %vm782 = vcmask 891904
      %v783 = vsel %vm782, %v773, %v775
      %v784 = vsel %vm782, %v775, %v777
      %v785 = vsel %vm782, %v777, %v779
      %v786 = vsel %vm782, %v779, %v781
      %v788 = vsel %vm236, %v745, 0
      %v791 = vsel %vm240, %v783, 0
      %v794 = vsel %vm240, %v784, 0
      %v797 = vsel %vm240, %v785, 0
      %v800 = vsel %vm240, %v786, 0
      %802 = vmatprep.subr.bf16.mxu0 %v794
      %803 = vmatpush1.bf16.msra.mxu0 %v791
      %804 = vmatprep.subr.bf16.mxu0 0
      %805 = vmatpush1.bf16.msra.mxu0 0
      %806 = vmatprep.subr.bf16.mxu0 0
      %807 = vmatpush1.bf16.msra.mxu0 0
      %808 = vmatprep.subr.bf16.mxu0 0
      %809 = vmatpush1.bf16.msra.mxu0 0
      %810 = vmatprep.subr.bf16.mxu0 0
      %811 = vmatpush1.bf16.msra.mxu0 0
      %812 = vmatprep.subr.bf16.mxu0 0
      %813 = vmatpush1.bf16.msra.mxu0 0
      %814 = vmatprep.subr.bf16.mxu0 0
      %815 = vmatpush1.bf16.msra.mxu0 0
      %816 = vmatprep.subr.bf16.mxu0 0
      %817 = vmatpush1.bf16.msra.mxu0 0
      %818 = vmatprep.subr.bf16.mxu0 0
      %819 = vmatpush1.bf16.msra.mxu0 0
      %820 = vmatprep.subr.bf16.mxu0 0
      %821 = vmatpush1.bf16.msra.mxu0 0
      %822 = vmatprep.subr.bf16.mxu0 0
      %823 = vmatpush1.bf16.msra.mxu0 0
      %824 = vmatprep.subr.bf16.mxu0 0
      %825 = vmatpush1.bf16.msra.mxu0 0
      %826 = vmatprep.subr.bf16.mxu0 0
      %827 = vmatpush1.bf16.msra.mxu0 0
      %828 = vmatprep.subr.bf16.mxu0 0
      %829 = vmatpush1.bf16.msra.mxu0 0
      %830 = vmatprep.subr.bf16.mxu0 0
      %831 = vmatpush1.bf16.msra.mxu0 0
      %832 = vmatprep.subr.bf16.mxu0 0
      %833 = vmatpush1.bf16.msra.mxu0 0
      %834 = vmatprep.mubr.bf16.mxu0 0
      %835 = vmatmul.mubr.bf16.gmra.mrb[0].mxu0 %v788
      %v836 = vpop.f32.mrb[0].mxu0
      %v837 = vadd.f32 0.0, %v836
      %v838 = vpop.f32.mrb[0].mxu0
      %v839 = vadd.f32 0.0, %v838
      %v840 = vpop.f32.mrb[0].mxu0
      %v841 = vpop.f32.mrb[0].mxu0
      %842 = vdwg.mxu0
      %843 = vmatprep.subr.bf16.mxu0 %v800
      %844 = vmatpush1.bf16.msra.mxu0 %v797
      %845 = vmatprep.subr.bf16.mxu0 0
      %846 = vmatpush1.bf16.msra.mxu0 0
      %847 = vmatprep.subr.bf16.mxu0 0
      %848 = vmatpush1.bf16.msra.mxu0 0
      %849 = vmatprep.subr.bf16.mxu0 0
      %850 = vmatpush1.bf16.msra.mxu0 0
      %851 = vmatprep.subr.bf16.mxu0 0
      %852 = vmatpush1.bf16.msra.mxu0 0
      %853 = vmatprep.subr.bf16.mxu0 0
      %854 = vmatpush1.bf16.msra.mxu0 0
      %855 = vmatprep.subr.bf16.mxu0 0
      %856 = vmatpush1.bf16.msra.mxu0 0
      %857 = vmatprep.subr.bf16.mxu0 0
      %858 = vmatpush1.bf16.msra.mxu0 0
      %859 = vmatprep.subr.bf16.mxu0 0
      %860 = vmatpush1.bf16.msra.mxu0 0
      %861 = vmatprep.subr.bf16.mxu0 0
      %862 = vmatpush1.bf16.msra.mxu0 0
      %863 = vmatprep.subr.bf16.mxu0 0
      %864 = vmatpush1.bf16.msra.mxu0 0
      %865 = vmatprep.subr.bf16.mxu0 0
      %866 = vmatpush1.bf16.msra.mxu0 0
      %867 = vmatprep.subr.bf16.mxu0 0
      %868 = vmatpush1.bf16.msra.mxu0 0
      %869 = vmatprep.subr.bf16.mxu0 0
      %870 = vmatpush1.bf16.msra.mxu0 0
      %871 = vmatprep.subr.bf16.mxu0 0
      %872 = vmatpush1.bf16.msra.mxu0 0
      %873 = vmatprep.subr.bf16.mxu0 0
      %874 = vmatpush1.bf16.msra.mxu0 0
      %875 = vmatprep.mubr.bf16.mxu0 0
      %876 = vmatmul.mubr.bf16.gmra.mrb[0].mxu0 %v788
      %v877 = vpop.f32.mrb[0].mxu0
      %v878 = vadd.f32 0.0, %v877
      %v879 = vpop.f32.mrb[0].mxu0
      %v880 = vadd.f32 0.0, %v879
      %v881 = vpop.f32.mrb[0].mxu0
      %v882 = vpop.f32.mrb[0].mxu0
      %883 = vdwg.mxu0
      %v884 = vadd.f32 %v738, %v837
      %v885 = vadd.f32 %v739, %v839
      %v886 = vadd.f32 %v740, %v878
      %v887 = vadd.f32 %v741, %v880
      %v888 = vld [vmem:[%s180] sm:$0xff]
      %v889 = vld [vmem:[%s180 + $0x8] sm:$0x3]
      %s890 = scalar_lea.vmem %s1, 20
      %v891 = vld [vmem:[%s890] sm:$0xf]
      %v894 = vcombine.high %v888, %v888
      %v896 = vunpack.c.l.s4 1983009808
      %v897 = vunpack.c.0.s8 %v896
      %v898 = vlaneseq
      %v899 = vshrl.u32 %v898, 7
      %v900 = vsub.s32 %v897, %v899
      %v901 = vrot.slane %v888, %v900
      %v903 = vunpack.c.l.s4 1983009808
      %v904 = vunpack.c.0.s8 %v903
      %v905 = vlaneseq
      %v906 = vshrl.u32 %v905, 7
      %v907 = vsub.s32 %v904, %v906
      %v908 = vrot.slane %v894, %v907
      %v909 = vcombine.high %v901, %v901
      %v910 = vcombine.high %v908, %v908
      %v912 = vunpack.c.l.s4 1983009808
      %v913 = vunpack.c.0.s8 %v912
      %v914 = vlaneseq
      %v915 = vshrl.u32 %v914, 7
      %v916 = vsub.s32 %v913, %v915
      %v917 = vrot.slane %v889, %v916
      %918 = vrot.lane.b32.xlu0 %v901, 108
      %v919 = vpop.permute.xlu0 %918
      %920 = vrot.lane.b32.xlu0 %v909, 108
      %v921 = vpop.permute.xlu0 %920
      %922 = vrot.lane.b32.xlu0 %v908, 108
      %v923 = vpop.permute.xlu0 %922
      %924 = vrot.lane.b32.xlu0 %v910, 108
      %v925 = vpop.permute.xlu0 %924
      %926 = vrot.lane.b32.xlu0 %v917, 108
      %v927 = vpop.permute.xlu0 %926
      %vm928 = vcmask 883712
      %v929 = vsel %vm928, %v919, %v921
      %v930 = vsel %vm928, %v921, %v923
      %v931 = vsel %vm928, %v923, %v925
      %v932 = vsel %vm928, %v925, %v927
      %v934 = vsel %vm236, %v891, 0
      %v937 = vsel %vm240, %v929, 0
      %v940 = vsel %vm240, %v930, 0
      %v943 = vsel %vm240, %v931, 0
      %v946 = vsel %vm240, %v932, 0
      %948 = vmatprep.subr.bf16.mxu0 %v940
      %949 = vmatpush1.bf16.msra.mxu0 %v937
      %950 = vmatprep.subr.bf16.mxu0 0
      %951 = vmatpush1.bf16.msra.mxu0 0
      %952 = vmatprep.subr.bf16.mxu0 0
      %953 = vmatpush1.bf16.msra.mxu0 0
      %954 = vmatprep.subr.bf16.mxu0 0
      %955 = vmatpush1.bf16.msra.mxu0 0
      %956 = vmatprep.subr.bf16.mxu0 0
      %957 = vmatpush1.bf16.msra.mxu0 0
      %958 = vmatprep.subr.bf16.mxu0 0
      %959 = vmatpush1.bf16.msra.mxu0 0
      %960 = vmatprep.subr.bf16.mxu0 0
      %961 = vmatpush1.bf16.msra.mxu0 0
      %962 = vmatprep.subr.bf16.mxu0 0
      %963 = vmatpush1.bf16.msra.mxu0 0
      %964 = vmatprep.subr.bf16.mxu0 0
      %965 = vmatpush1.bf16.msra.mxu0 0
      %966 = vmatprep.subr.bf16.mxu0 0
      %967 = vmatpush1.bf16.msra.mxu0 0
      %968 = vmatprep.subr.bf16.mxu0 0
      %969 = vmatpush1.bf16.msra.mxu0 0
      %970 = vmatprep.subr.bf16.mxu0 0
      %971 = vmatpush1.bf16.msra.mxu0 0
      %972 = vmatprep.subr.bf16.mxu0 0
      %973 = vmatpush1.bf16.msra.mxu0 0
      %974 = vmatprep.subr.bf16.mxu0 0
      %975 = vmatpush1.bf16.msra.mxu0 0
      %976 = vmatprep.subr.bf16.mxu0 0
      %977 = vmatpush1.bf16.msra.mxu0 0
      %978 = vmatprep.subr.bf16.mxu0 0
      %979 = vmatpush1.bf16.msra.mxu0 0
      %980 = vmatprep.mubr.bf16.mxu0 0
      %981 = vmatmul.mubr.bf16.gmra.mrb[0].mxu0 %v934
      %v982 = vpop.f32.mrb[0].mxu0
      %v983 = vadd.f32 0.0, %v982
      %v984 = vpop.f32.mrb[0].mxu0
      %v985 = vadd.f32 0.0, %v984
      %v986 = vpop.f32.mrb[0].mxu0
      %v987 = vpop.f32.mrb[0].mxu0
      %988 = vdwg.mxu0
      %989 = vmatprep.subr.bf16.mxu0 %v946
      %990 = vmatpush1.bf16.msra.mxu0 %v943
      %991 = vmatprep.subr.bf16.mxu0 0
      %992 = vmatpush1.bf16.msra.mxu0 0
      %993 = vmatprep.subr.bf16.mxu0 0
      %994 = vmatpush1.bf16.msra.mxu0 0
      %995 = vmatprep.subr.bf16.mxu0 0
      %996 = vmatpush1.bf16.msra.mxu0 0
      %997 = vmatprep.subr.bf16.mxu0 0
      %998 = vmatpush1.bf16.msra.mxu0 0
      %999 = vmatprep.subr.bf16.mxu0 0
      %1000 = vmatpush1.bf16.msra.mxu0 0
      %1001 = vmatprep.subr.bf16.mxu0 0
      %1002 = vmatpush1.bf16.msra.mxu0 0
      %1003 = vmatprep.subr.bf16.mxu0 0
      %1004 = vmatpush1.bf16.msra.mxu0 0
      %1005 = vmatprep.subr.bf16.mxu0 0
      %1006 = vmatpush1.bf16.msra.mxu0 0
      %1007 = vmatprep.subr.bf16.mxu0 0
      %1008 = vmatpush1.bf16.msra.mxu0 0
      %1009 = vmatprep.subr.bf16.mxu0 0
      %1010 = vmatpush1.bf16.msra.mxu0 0
      %1011 = vmatprep.subr.bf16.mxu0 0
      %1012 = vmatpush1.bf16.msra.mxu0 0
      %1013 = vmatprep.subr.bf16.mxu0 0
      %1014 = vmatpush1.bf16.msra.mxu0 0
      %1015 = vmatprep.subr.bf16.mxu0 0
      %1016 = vmatpush1.bf16.msra.mxu0 0
      %1017 = vmatprep.subr.bf16.mxu0 0
      %1018 = vmatpush1.bf16.msra.mxu0 0
      %1019 = vmatprep.subr.bf16.mxu0 0
      %1020 = vmatpush1.bf16.msra.mxu0 0
      %1021 = vmatprep.mubr.bf16.mxu0 0
      %1022 = vmatmul.mubr.bf16.gmra.mrb[0].mxu0 %v934
      %v1023 = vpop.f32.mrb[0].mxu0
      %v1024 = vadd.f32 0.0, %v1023
      %v1025 = vpop.f32.mrb[0].mxu0
      %v1026 = vadd.f32 0.0, %v1025
      %v1027 = vpop.f32.mrb[0].mxu0
      %v1028 = vpop.f32.mrb[0].mxu0
      %1029 = vdwg.mxu0
      %v1030 = vadd.f32 %v884, %v983
      %v1031 = vadd.f32 %v885, %v985
      %v1032 = vadd.f32 %v886, %v1024
      %v1033 = vadd.f32 %v887, %v1026
      %v1034 = vld [vmem:[%s180] sm:$0xff]
      %v1035 = vld [vmem:[%s180 + $0x8] sm:$0x3]
      %s1036 = scalar_lea.vmem %s1, 24
      %v1037 = vld [vmem:[%s1036] sm:$0xf]
      %v1040 = vcombine.high %v1034, %v1034
      %v1042 = vunpack.c.l.s4 1983009808
      %v1043 = vunpack.c.0.s8 %v1042
      %v1044 = vlaneseq
      %v1045 = vshrl.u32 %v1044, 7
      %v1046 = vsub.s32 %v1043, %v1045
      %v1047 = vrot.slane %v1034, %v1046
      %v1049 = vunpack.c.l.s4 1983009808
      %v1050 = vunpack.c.0.s8 %v1049
      %v1051 = vlaneseq
      %v1052 = vshrl.u32 %v1051, 7
      %v1053 = vsub.s32 %v1050, %v1052
      %v1054 = vrot.slane %v1040, %v1053
      %v1055 = vcombine.high %v1047, %v1047
      %v1056 = vcombine.high %v1054, %v1054
      %v1058 = vunpack.c.l.s4 1983009808
      %v1059 = vunpack.c.0.s8 %v1058
      %v1060 = vlaneseq
      %v1061 = vshrl.u32 %v1060, 7
      %v1062 = vsub.s32 %v1059, %v1061
      %v1063 = vrot.slane %v1035, %v1062
      %1064 = vrot.lane.b32.xlu0 %v1047, 92
      %v1065 = vpop.permute.xlu0 %1064
      %1066 = vrot.lane.b32.xlu0 %v1055, 92
      %v1067 = vpop.permute.xlu0 %1066
      %1068 = vrot.lane.b32.xlu0 %v1054, 92
      %v1069 = vpop.permute.xlu0 %1068
      %1070 = vrot.lane.b32.xlu0 %v1056, 92
      %v1071 = vpop.permute.xlu0 %1070
      %1072 = vrot.lane.b32.xlu0 %v1063, 92
      %v1073 = vpop.permute.xlu0 %1072
      %vm1074 = vcmask 752640
      %v1075 = vsel %vm1074, %v1065, %v1067
      %v1076 = vsel %vm1074, %v1067, %v1069
      %v1077 = vsel %vm1074, %v1069, %v1071
      %v1078 = vsel %vm1074, %v1071, %v1073
      %v1080 = vsel %vm236, %v1037, 0
      %v1083 = vsel %vm240, %v1075, 0
      %v1086 = vsel %vm240, %v1076, 0
      %v1089 = vsel %vm240, %v1077, 0
      %v1092 = vsel %vm240, %v1078, 0
      %1094 = vmatprep.subr.bf16.mxu0 %v1086
      %1095 = vmatpush1.bf16.msra.mxu0 %v1083
      %1096 = vmatprep.subr.bf16.mxu0 0
      %1097 = vmatpush1.bf16.msra.mxu0 0
      %1098 = vmatprep.subr.bf16.mxu0 0
      %1099 = vmatpush1.bf16.msra.mxu0 0
      %1100 = vmatprep.subr.bf16.mxu0 0
      %1101 = vmatpush1.bf16.msra.mxu0 0
      %1102 = vmatprep.subr.bf16.mxu0 0
      %1103 = vmatpush1.bf16.msra.mxu0 0
      %1104 = vmatprep.subr.bf16.mxu0 0
      %1105 = vmatpush1.bf16.msra.mxu0 0
      %1106 = vmatprep.subr.bf16.mxu0 0
      %1107 = vmatpush1.bf16.msra.mxu0 0
      %1108 = vmatprep.subr.bf16.mxu0 0
      %1109 = vmatpush1.bf16.msra.mxu0 0
      %1110 = vmatprep.subr.bf16.mxu0 0
      %1111 = vmatpush1.bf16.msra.mxu0 0
      %1112 = vmatprep.subr.bf16.mxu0 0
      %1113 = vmatpush1.bf16.msra.mxu0 0
      %1114 = vmatprep.subr.bf16.mxu0 0
      %1115 = vmatpush1.bf16.msra.mxu0 0
      %1116 = vmatprep.subr.bf16.mxu0 0
      %1117 = vmatpush1.bf16.msra.mxu0 0
      %1118 = vmatprep.subr.bf16.mxu0 0
      %1119 = vmatpush1.bf16.msra.mxu0 0
      %1120 = vmatprep.subr.bf16.mxu0 0
      %1121 = vmatpush1.bf16.msra.mxu0 0
      %1122 = vmatprep.subr.bf16.mxu0 0
      %1123 = vmatpush1.bf16.msra.mxu0 0
      %1124 = vmatprep.subr.bf16.mxu0 0
      %1125 = vmatpush1.bf16.msra.mxu0 0
      %1126 = vmatprep.mubr.bf16.mxu0 0
      %1127 = vmatmul.mubr.bf16.gmra.mrb[0].mxu0 %v1080
      %v1128 = vpop.f32.mrb[0].mxu0
      %v1129 = vadd.f32 0.0, %v1128
      %v1130 = vpop.f32.mrb[0].mxu0
      %v1131 = vadd.f32 0.0, %v1130
      %v1132 = vpop.f32.mrb[0].mxu0
      %v1133 = vpop.f32.mrb[0].mxu0
      %1134 = vdwg.mxu0
      %1135 = vmatprep.subr.bf16.mxu0 %v1092
      %1136 = vmatpush1.bf16.msra.mxu0 %v1089
      %1137 = vmatprep.subr.bf16.mxu0 0
      %1138 = vmatpush1.bf16.msra.mxu0 0
      %1139 = vmatprep.subr.bf16.mxu0 0
      %1140 = vmatpush1.bf16.msra.mxu0 0
      %1141 = vmatprep.subr.bf16.mxu0 0
      %1142 = vmatpush1.bf16.msra.mxu0 0
      %1143 = vmatprep.subr.bf16.mxu0 0
      %1144 = vmatpush1.bf16.msra.mxu0 0
      %1145 = vmatprep.subr.bf16.mxu0 0
      %1146 = vmatpush1.bf16.msra.mxu0 0
      %1147 = vmatprep.subr.bf16.mxu0 0
      %1148 = vmatpush1.bf16.msra.mxu0 0
      %1149 = vmatprep.subr.bf16.mxu0 0
      %1150 = vmatpush1.bf16.msra.mxu0 0
      %1151 = vmatprep.subr.bf16.mxu0 0
      %1152 = vmatpush1.bf16.msra.mxu0 0
      %1153 = vmatprep.subr.bf16.mxu0 0
      %1154 = vmatpush1.bf16.msra.mxu0 0
      %1155 = vmatprep.subr.bf16.mxu0 0
      %1156 = vmatpush1.bf16.msra.mxu0 0
      %1157 = vmatprep.subr.bf16.mxu0 0
      %1158 = vmatpush1.bf16.msra.mxu0 0
      %1159 = vmatprep.subr.bf16.mxu0 0
      %1160 = vmatpush1.bf16.msra.mxu0 0
      %1161 = vmatprep.subr.bf16.mxu0 0
      %1162 = vmatpush1.bf16.msra.mxu0 0
      %1163 = vmatprep.subr.bf16.mxu0 0
      %1164 = vmatpush1.bf16.msra.mxu0 0
      %1165 = vmatprep.subr.bf16.mxu0 0
      %1166 = vmatpush1.bf16.msra.mxu0 0
      %1167 = vmatprep.mubr.bf16.mxu0 0
      %1168 = vmatmul.mubr.bf16.gmra.mrb[0].mxu0 %v1080
      %v1169 = vpop.f32.mrb[0].mxu0
      %v1170 = vadd.f32 0.0, %v1169
      %v1171 = vpop.f32.mrb[0].mxu0
      %v1172 = vadd.f32 0.0, %v1171
      %v1173 = vpop.f32.mrb[0].mxu0
      %v1174 = vpop.f32.mrb[0].mxu0
      %1175 = vdwg.mxu0
      %v1176 = vadd.f32 %v1030, %v1129
      %v1177 = vadd.f32 %v1031, %v1131
      %v1178 = vadd.f32 %v1032, %v1170
      %v1179 = vadd.f32 %v1033, %v1172
      %v1180 = vld [vmem:[%s180] sm:$0xff]
      %v1181 = vld [vmem:[%s180 + $0x8] sm:$0x3]
      %s1182 = scalar_lea.vmem %s1, 28
      %v1183 = vld [vmem:[%s1182] sm:$0xf]
      %v1186 = vcombine.high %v1180, %v1180
      %v1188 = vunpack.c.l.s4 1983009808
      %v1189 = vunpack.c.0.s8 %v1188
      %v1190 = vlaneseq
      %v1191 = vshrl.u32 %v1190, 7
      %v1192 = vsub.s32 %v1189, %v1191
      %v1193 = vrot.slane %v1180, %v1192
      %v1195 = vunpack.c.l.s4 1983009808
      %v1196 = vunpack.c.0.s8 %v1195
      %v1197 = vlaneseq
      %v1198 = vshrl.u32 %v1197, 7
      %v1199 = vsub.s32 %v1196, %v1198
      %v1200 = vrot.slane %v1186, %v1199
      %v1201 = vcombine.high %v1193, %v1193
      %v1202 = vcombine.high %v1200, %v1200
      %v1204 = vunpack.c.l.s4 1983009808
      %v1205 = vunpack.c.0.s8 %v1204
      %v1206 = vlaneseq
      %v1207 = vshrl.u32 %v1206, 7
      %v1208 = vsub.s32 %v1205, %v1207
      %v1209 = vrot.slane %v1181, %v1208
      %1210 = vrot.lane.b32.xlu0 %v1193, 91
      %v1211 = vpop.permute.xlu0 %1210
      %1212 = vrot.lane.b32.xlu0 %v1201, 91
      %v1213 = vpop.permute.xlu0 %1212
      %1214 = vrot.lane.b32.xlu0 %v1200, 91
      %v1215 = vpop.permute.xlu0 %1214
      %1216 = vrot.lane.b32.xlu0 %v1202, 91
      %v1217 = vpop.permute.xlu0 %1216
      %1218 = vrot.lane.b32.xlu0 %v1209, 91
      %v1219 = vpop.permute.xlu0 %1218
      %vm1220 = vcmask 744448
      %v1221 = vsel %vm1220, %v1211, %v1213
      %v1222 = vsel %vm1220, %v1213, %v1215
      %v1223 = vsel %vm1220, %v1215, %v1217
      %v1224 = vsel %vm1220, %v1217, %v1219
      %v1226 = vsel %vm236, %v1183, 0
      %v1229 = vsel %vm240, %v1221, 0
      %v1232 = vsel %vm240, %v1222, 0
      %v1235 = vsel %vm240, %v1223, 0
      %v1238 = vsel %vm240, %v1224, 0
      %1240 = vmatprep.subr.bf16.mxu0 %v1232
      %1241 = vmatpush1.bf16.msra.mxu0 %v1229
      %1242 = vmatprep.subr.bf16.mxu0 0
      %1243 = vmatpush1.bf16.msra.mxu0 0
      %1244 = vmatprep.subr.bf16.mxu0 0
      %1245 = vmatpush1.bf16.msra.mxu0 0
      %1246 = vmatprep.subr.bf16.mxu0 0
      %1247 = vmatpush1.bf16.msra.mxu0 0
      %1248 = vmatprep.subr.bf16.mxu0 0
      %1249 = vmatpush1.bf16.msra.mxu0 0
      %1250 = vmatprep.subr.bf16.mxu0 0
      %1251 = vmatpush1.bf16.msra.mxu0 0
      %1252 = vmatprep.subr.bf16.mxu0 0
      %1253 = vmatpush1.bf16.msra.mxu0 0
      %1254 = vmatprep.subr.bf16.mxu0 0
      %1255 = vmatpush1.bf16.msra.mxu0 0
      %1256 = vmatprep.subr.bf16.mxu0 0
      %1257 = vmatpush1.bf16.msra.mxu0 0
      %1258 = vmatprep.subr.bf16.mxu0 0
      %1259 = vmatpush1.bf16.msra.mxu0 0
      %1260 = vmatprep.subr.bf16.mxu0 0
      %1261 = vmatpush1.bf16.msra.mxu0 0
      %1262 = vmatprep.subr.bf16.mxu0 0
      %1263 = vmatpush1.bf16.msra.mxu0 0
      %1264 = vmatprep.subr.bf16.mxu0 0
      %1265 = vmatpush1.bf16.msra.mxu0 0
      %1266 = vmatprep.subr.bf16.mxu0 0
      %1267 = vmatpush1.bf16.msra.mxu0 0
      %1268 = vmatprep.subr.bf16.mxu0 0
      %1269 = vmatpush1.bf16.msra.mxu0 0
      %1270 = vmatprep.subr.bf16.mxu0 0
      %1271 = vmatpush1.bf16.msra.mxu0 0
      %1272 = vmatprep.mubr.bf16.mxu0 0
      %1273 = vmatmul.mubr.bf16.gmra.mrb[0].mxu0 %v1226
      %v1274 = vpop.f32.mrb[0].mxu0
      %v1275 = vadd.f32 0.0, %v1274
      %v1276 = vpop.f32.mrb[0].mxu0
      %v1277 = vadd.f32 0.0, %v1276
      %v1278 = vpop.f32.mrb[0].mxu0
      %v1279 = vpop.f32.mrb[0].mxu0
      %1280 = vdwg.mxu0
      %1281 = vmatprep.subr.bf16.mxu0 %v1238
      %1282 = vmatpush1.bf16.msra.mxu0 %v1235
      %1283 = vmatprep.subr.bf16.mxu0 0
      %1284 = vmatpush1.bf16.msra.mxu0 0
      %1285 = vmatprep.subr.bf16.mxu0 0
      %1286 = vmatpush1.bf16.msra.mxu0 0
      %1287 = vmatprep.subr.bf16.mxu0 0
      %1288 = vmatpush1.bf16.msra.mxu0 0
      %1289 = vmatprep.subr.bf16.mxu0 0
      %1290 = vmatpush1.bf16.msra.mxu0 0
      %1291 = vmatprep.subr.bf16.mxu0 0
      %1292 = vmatpush1.bf16.msra.mxu0 0
      %1293 = vmatprep.subr.bf16.mxu0 0
      %1294 = vmatpush1.bf16.msra.mxu0 0
      %1295 = vmatprep.subr.bf16.mxu0 0
      %1296 = vmatpush1.bf16.msra.mxu0 0
      %1297 = vmatprep.subr.bf16.mxu0 0
      %1298 = vmatpush1.bf16.msra.mxu0 0
      %1299 = vmatprep.subr.bf16.mxu0 0
      %1300 = vmatpush1.bf16.msra.mxu0 0
      %1301 = vmatprep.subr.bf16.mxu0 0
      %1302 = vmatpush1.bf16.msra.mxu0 0
      %1303 = vmatprep.subr.bf16.mxu0 0
      %1304 = vmatpush1.bf16.msra.mxu0 0
      %1305 = vmatprep.subr.bf16.mxu0 0
      %1306 = vmatpush1.bf16.msra.mxu0 0
      %1307 = vmatprep.subr.bf16.mxu0 0
      %1308 = vmatpush1.bf16.msra.mxu0 0
      %1309 = vmatprep.subr.bf16.mxu0 0
      %1310 = vmatpush1.bf16.msra.mxu0 0
      %1311 = vmatprep.subr.bf16.mxu0 0
      %1312 = vmatpush1.bf16.msra.mxu0 0
      %1313 = vmatprep.mubr.bf16.mxu0 0
      %1314 = vmatmul.mubr.bf16.gmra.mrb[0].mxu0 %v1226
      %v1315 = vpop.f32.mrb[0].mxu0
      %v1316 = vadd.f32 0.0, %v1315
      %v1317 = vpop.f32.mrb[0].mxu0
      %v1318 = vadd.f32 0.0, %v1317
      %v1319 = vpop.f32.mrb[0].mxu0
      %v1320 = vpop.f32.mrb[0].mxu0
      %1321 = vdwg.mxu0
      %v1322 = vadd.f32 %v1176, %v1275
      %v1323 = vadd.f32 %v1177, %v1277
      %v1324 = vadd.f32 %v1178, %v1316
      %v1325 = vadd.f32 %v1179, %v1318
      %v1326 = vld [vmem:[%s180] sm:$0xff]
      %v1327 = vld [vmem:[%s180 + $0x8] sm:$0x3]
      %s1328 = scalar_lea.vmem %s1, 32
      %v1329 = vld [vmem:[%s1328] sm:$0xf]
      %v1332 = vcombine.high %v1326, %v1326
      %v1334 = vunpack.c.l.s4 1983009808
      %v1335 = vunpack.c.0.s8 %v1334
      %v1336 = vlaneseq
      %v1337 = vshrl.u32 %v1336, 7
      %v1338 = vsub.s32 %v1335, %v1337
      %v1339 = vrot.slane %v1326, %v1338
      %v1341 = vunpack.c.l.s4 1983009808
      %v1342 = vunpack.c.0.s8 %v1341
      %v1343 = vlaneseq
      %v1344 = vshrl.u32 %v1343, 7
      %v1345 = vsub.s32 %v1342, %v1344
      %v1346 = vrot.slane %v1332, %v1345
      %v1347 = vcombine.high %v1339, %v1339
      %v1348 = vcombine.high %v1346, %v1346
      %v1350 = vunpack.c.l.s4 1983009808
      %v1351 = vunpack.c.0.s8 %v1350
      %v1352 = vlaneseq
      %v1353 = vshrl.u32 %v1352, 7
      %v1354 = vsub.s32 %v1351, %v1353
      %v1355 = vrot.slane %v1327, %v1354
      %1356 = vrot.lane.b32.xlu0 %v1339, 90
      %v1357 = vpop.permute.xlu0 %1356
      %1358 = vrot.lane.b32.xlu0 %v1347, 90
      %v1359 = vpop.permute.xlu0 %1358
      %1360 = vrot.lane.b32.xlu0 %v1346, 90
      %v1361 = vpop.permute.xlu0 %1360
      %1362 = vrot.lane.b32.xlu0 %v1348, 90
      %v1363 = vpop.permute.xlu0 %1362
      %1364 = vrot.lane.b32.xlu0 %v1355, 90
      %v1365 = vpop.permute.xlu0 %1364
      %vm1366 = vcmask 736256
      %v1367 = vsel %vm1366, %v1357, %v1359
      %v1368 = vsel %vm1366, %v1359, %v1361
      %v1369 = vsel %vm1366, %v1361, %v1363
      %v1370 = vsel %vm1366, %v1363, %v1365
      %v1372 = vsel %vm236, %v1329, 0
      %v1375 = vsel %vm240, %v1367, 0
      %v1378 = vsel %vm240, %v1368, 0
      %v1381 = vsel %vm240, %v1369, 0
      %v1384 = vsel %vm240, %v1370, 0
      %1386 = vmatprep.subr.bf16.mxu0 %v1378
      %1387 = vmatpush1.bf16.msra.mxu0 %v1375
      %1388 = vmatprep.subr.bf16.mxu0 0
      %1389 = vmatpush1.bf16.msra.mxu0 0
      %1390 = vmatprep.subr.bf16.mxu0 0
      %1391 = vmatpush1.bf16.msra.mxu0 0
      %1392 = vmatprep.subr.bf16.mxu0 0
      %1393 = vmatpush1.bf16.msra.mxu0 0
      %1394 = vmatprep.subr.bf16.mxu0 0
      %1395 = vmatpush1.bf16.msra.mxu0 0
      %1396 = vmatprep.subr.bf16.mxu0 0
      %1397 = vmatpush1.bf16.msra.mxu0 0
      %1398 = vmatprep.subr.bf16.mxu0 0
      %1399 = vmatpush1.bf16.msra.mxu0 0
      %1400 = vmatprep.subr.bf16.mxu0 0
      %1401 = vmatpush1.bf16.msra.mxu0 0
      %1402 = vmatprep.subr.bf16.mxu0 0
      %1403 = vmatpush1.bf16.msra.mxu0 0
      %1404 = vmatprep.subr.bf16.mxu0 0
      %1405 = vmatpush1.bf16.msra.mxu0 0
      %1406 = vmatprep.subr.bf16.mxu0 0
      %1407 = vmatpush1.bf16.msra.mxu0 0
      %1408 = vmatprep.subr.bf16.mxu0 0
      %1409 = vmatpush1.bf16.msra.mxu0 0
      %1410 = vmatprep.subr.bf16.mxu0 0
      %1411 = vmatpush1.bf16.msra.mxu0 0
      %1412 = vmatprep.subr.bf16.mxu0 0
      %1413 = vmatpush1.bf16.msra.mxu0 0
      %1414 = vmatprep.subr.bf16.mxu0 0
      %1415 = vmatpush1.bf16.msra.mxu0 0
      %1416 = vmatprep.subr.bf16.mxu0 0
      %1417 = vmatpush1.bf16.msra.mxu0 0
      %1418 = vmatprep.mubr.bf16.mxu0 0
      %1419 = vmatmul.mubr.bf16.gmra.mrb[0].mxu0 %v1372
      %v1420 = vpop.f32.mrb[0].mxu0
      %v1421 = vadd.f32 0.0, %v1420
      %v1422 = vpop.f32.mrb[0].mxu0
      %v1423 = vadd.f32 0.0, %v1422
      %v1424 = vpop.f32.mrb[0].mxu0
      %v1425 = vpop.f32.mrb[0].mxu0
      %1426 = vdwg.mxu0
      %1427 = vmatprep.subr.bf16.mxu0 %v1384
      %1428 = vmatpush1.bf16.msra.mxu0 %v1381
      %1429 = vmatprep.subr.bf16.mxu0 0
      %1430 = vmatpush1.bf16.msra.mxu0 0
      %1431 = vmatprep.subr.bf16.mxu0 0
      %1432 = vmatpush1.bf16.msra.mxu0 0
      %1433 = vmatprep.subr.bf16.mxu0 0
      %1434 = vmatpush1.bf16.msra.mxu0 0
      %1435 = vmatprep.subr.bf16.mxu0 0
      %1436 = vmatpush1.bf16.msra.mxu0 0
      %1437 = vmatprep.subr.bf16.mxu0 0
      %1438 = vmatpush1.bf16.msra.mxu0 0
      %1439 = vmatprep.subr.bf16.mxu0 0
      %1440 = vmatpush1.bf16.msra.mxu0 0
      %1441 = vmatprep.subr.bf16.mxu0 0
      %1442 = vmatpush1.bf16.msra.mxu0 0
      %1443 = vmatprep.subr.bf16.mxu0 0
      %1444 = vmatpush1.bf16.msra.mxu0 0
      %1445 = vmatprep.subr.bf16.mxu0 0
      %1446 = vmatpush1.bf16.msra.mxu0 0
      %1447 = vmatprep.subr.bf16.mxu0 0
      %1448 = vmatpush1.bf16.msra.mxu0 0
      %1449 = vmatprep.subr.bf16.mxu0 0
      %1450 = vmatpush1.bf16.msra.mxu0 0
      %1451 = vmatprep.subr.bf16.mxu0 0
      %1452 = vmatpush1.bf16.msra.mxu0 0
      %1453 = vmatprep.subr.bf16.mxu0 0
      %1454 = vmatpush1.bf16.msra.mxu0 0
      %1455 = vmatprep.subr.bf16.mxu0 0
      %1456 = vmatpush1.bf16.msra.mxu0 0
      %1457 = vmatprep.subr.bf16.mxu0 0
      %1458 = vmatpush1.bf16.msra.mxu0 0
      %1459 = vmatprep.mubr.bf16.mxu0 0
      %1460 = vmatmul.mubr.bf16.gmra.mrb[0].mxu0 %v1372
      %v1461 = vpop.f32.mrb[0].mxu0
      %v1462 = vadd.f32 0.0, %v1461
      %v1463 = vpop.f32.mrb[0].mxu0
      %v1464 = vadd.f32 0.0, %v1463
      %v1465 = vpop.f32.mrb[0].mxu0
      %v1466 = vpop.f32.mrb[0].mxu0
      %1467 = vdwg.mxu0
      %v1468 = vadd.f32 %v1322, %v1421
      %v1469 = vadd.f32 %v1323, %v1423
      %v1470 = vadd.f32 %v1324, %v1462
      %v1471 = vadd.f32 %v1325, %v1464
      %v1472 = vld [vmem:[%s2] sm:$0xf]
      %v1474 = vlaneseq
      %v1475 = vshrl.u32 %v1474, 7
      %v1476 = vsub.s32 0, %v1475
      %v1477 = vrot.slane %v1472, %v1476
      %v1478 = vlaneseq
      %v1479 = vshrl.u32 %v1478, 7
      %v1480 = vsub.s32 1, %v1479
      %v1481 = vrot.slane %v1472, %v1480
      %v1482 = vlaneseq
      %v1483 = vshrl.u32 %v1482, 7
      %v1484 = vsub.s32 2, %v1483
      %v1485 = vrot.slane %v1472, %v1484
      %v1486 = vlaneseq
      %v1487 = vshrl.u32 %v1486, 7
      %v1488 = vsub.s32 3, %v1487
      %v1489 = vrot.slane %v1472, %v1488
      %v1494 = vmul.f32 %v1468, %v1477
      %v1495 = vmul.f32 %v1469, %v1481
      %v1496 = vmul.f32 %v1470, %v1485
      %v1497 = vmul.f32 %v1471, %v1489
      %v1498 = vld [vmem:[%s3] sm:$0xff]
      %v1499 = vadd.f32 %v1494, %v1495
      %v1500 = vadd.f32 %v1499, %v1496
      %v1501 = vadd.f32 %v1500, %v1497
      %1502 = vadd.xlane.f32.xlu0 %v1501
      %v1503 = vpop.xlane.xlu0 %1502
      %v1504 = vadd.f32 %v1498, %v1503
      %vm1505 = vcmask 7168
      %1506 = vst.msk [vmem:[%s3] sm:$0xff] %vm1505, %v1504
      %v1507 = vld [vmem:[%s4] sm:$0xff]
      %v1508 = vmul.f32 %v1494, %v1468
      %v1509 = vmul.f32 %v1495, %v1469
      %v1510 = vmul.f32 %v1496, %v1470
      %v1511 = vmul.f32 %v1497, %v1471
      %v1512 = vadd.f32 %v1508, %v1509
      %v1513 = vadd.f32 %v1512, %v1510
      %v1514 = vadd.f32 %v1513, %v1511
      %1515 = vadd.xlane.f32.xlu0 %v1514
      %v1516 = vpop.xlane.xlu0 %1515
      %v1517 = vadd.f32 %v1507, %v1516
      %1518 = vst.msk [vmem:[%s4] sm:$0xff] %vm1505, %v1517
      // Predicated region
      $region37: #{tpu_custom_call.1} parent=31 // pred_check
        %p1519 = pneg %p97
      $region38: #{tpu_custom_call.1} parent=31 // pred_check_branch
        %1521 = sbr.rel (%p1519) target = $region40
      $region39: #{tpu_custom_call.1} parent=31 // pred_region
        _
      $region40: #{tpu_custom_call.1} parent=31 // pred_fallthru
        _
      // Predicated region
      $region41: #{tpu_custom_call.1} parent=31 // pred_check
        %p1522 = pneg %p118
      $region42: #{tpu_custom_call.1} parent=31 // pred_check_branch
        %1524 = sbr.rel (%p1522) target = $region44
      $region43: #{tpu_custom_call.1} parent=31 // pred_region
        _
      $region44: #{tpu_custom_call.1} parent=31 // pred_fallthru
        _
      // Predicated region
      $region45: #{tpu_custom_call.1} parent=31 // pred_check
        %p1525 = pneg %p97
      $region46: #{tpu_custom_call.1} parent=31 // pred_check_branch
        %1527 = sbr.rel (%p1525) target = $region48
      $region47: #{tpu_custom_call.1} parent=31 // pred_region
        _
      $region48: #{tpu_custom_call.1} parent=31 // pred_fallthru
        _
      // Predicated region
      $region49: #{tpu_custom_call.1} parent=31 // pred_check
        %p1528 = pneg %p118
      $region50: #{tpu_custom_call.1} parent=31 // pred_check_branch
        %1530 = sbr.rel (%p1528) target = $region52
      $region51: #{tpu_custom_call.1} parent=31 // pred_region
        _
      $region52: #{tpu_custom_call.1} parent=31 // pred_fallthru
        _
    $region32: #{tpu_custom_call.1} parent=5 // pred_fallthru
      _
    %p1531 = scmp.le.s32.totalorder 2, %s11
    // Predicated region
    $region53: #{tpu_custom_call.1} parent=5 // pred_check
      %p1532 = pneg %p1531
    $region54: #{tpu_custom_call.1} parent=5 // pred_check_branch
      %1534 = sbr.rel (%p1532) target = $region56
    $region55: #{tpu_custom_call.1} parent=5 // pred_region
      %s1535 = ssub.s32 %s11, 2
    $region56: #{tpu_custom_call.1} parent=5 // pred_fallthru
      _
  $region6: #{tpu_custom_call.1} parent=0 // loop_footer
    %s15 = sadd.s32 1, %s11
  $region7: #{tpu_custom_call.1} parent=0 // loop_footer_branch
    %10 = sbr.rel target = $region3
  $region8: #{tpu_custom_call.1} parent=0 // loop_exit
    _

</llo_original>
